<compile_context>
chip_gen: v5e
topology: v5e:2x2
jax: 0.10.0
libtpu: 0.0.40
codegen_flags: <defaults>
</compile_context>

<pallas_src>
import functools

import jax
import jax.numpy as jnp
from jax import lax
from jax.experimental import pallas as pl
from jax.experimental.pallas import tpu as pltpu


def _encoder_layer_kernel(
    x_ref,                               # (1, L, D)  f32 full sequence for this batch element
    wq_ref, bq_ref,                      # (H, D, dk) mxu, (H, 1, dk) f32  (1/sqrt(dk) folded in)
    wk_ref, bk_ref,                      # (H, D, dk) mxu, (H, 1, dk) f32
    wv_ref, bv_ref,                      # (H, D, dv) mxu, (H, 1, dv) f32
    wfc_ref, bfc_ref,                    # (H, dv, D) mxu, (1, D) f32
    g1_ref, be1_ref,                     # (1, D) f32
    w1_ref, b1_ref,                      # (D, F) mxu, (1, F) f32
    w2_ref, b2_ref,                      # (F, D) mxu, (1, D) f32
    g2_ref, be2_ref,                     # (1, D) f32
    out_ref,                             # (1, TQ, D)
    attn_ref,                            # (1, H, TQ, L)
    k_scr,                               # VMEM (H, L, dk) mxu  — per-batch K, head-major
    v_scr,                               # VMEM (H, L, dv) mxu  — per-batch V, head-major
    acc_scr,                             # VMEM (TQ, D) f32     — fc-projected attention output
    *, n_head, d_k, d_v, tq, mxu_dtype, approx_recip,
):
    qi = pl.program_id(1)
    d_model = x_ref.shape[-1]

    # --- per-batch K/V projection into head-major VMEM scratch (runs at qi == 0).
    # The q grid axis MUST stay sequential ("arbitrary") for this reuse to be valid.
    @pl.when(qi == 0)
    def _():
        x_full = x_ref[0].astype(mxu_dtype)                        # (L, D)

        @pl.loop(0, n_head)
        def _(h):
            k_scr[h] = (jnp.dot(x_full, wk_ref[h], preferred_element_type=jnp.float32)
                        + bk_ref[h]).astype(mxu_dtype)
            v_scr[h] = (jnp.dot(x_full, wv_ref[h], preferred_element_type=jnp.float32)
                        + bv_ref[h]).astype(mxu_dtype)

    row0 = pl.multiple_of(qi * tq, tq)
    x_res = x_ref[0, pl.ds(row0, tq), :]                           # (TQ, D) f32 residual
    x_tile = x_res.astype(mxu_dtype)

    acc_scr[...] = jnp.zeros_like(acc_scr)

    # --- per-head attention; fori-style loop bounds live ranges to one head at a time.
    @pl.loop(0, n_head)
    def _(h):
        # Per-tile Q projection for this head (temperature already folded into wq/bq).
        qh = (jnp.dot(x_tile, wq_ref[h], preferred_element_type=jnp.float32)
              + bq_ref[h]).astype(mxu_dtype)                       # (TQ, dk)
        kh = k_scr[h]                                              # (L, dk)
        vh = v_scr[h]                                              # (L, dv)

        # QK^T without materializing a transpose: contract both on their last axis.
        s = lax.dot_general(qh, kh, (((1,), (1,)), ((), ())),
                            preferred_element_type=jnp.float32)    # (TQ, L) f32
        s = s - jnp.max(s, axis=-1, keepdims=True)
        e = jnp.exp(s)
        inv = pl.reciprocal(jnp.sum(e, axis=-1, keepdims=True), approx=approx_recip)
        p = e * inv                                                # softmax, f32
        attn_ref[0, h] = p.astype(attn_ref.dtype)

        oh = jnp.dot(p.astype(mxu_dtype), vh,
                     preferred_element_type=jnp.float32)           # (TQ, dv)
        # Fold the output projection per head into a lane-dense (TQ, D) accumulator
        # (equivalent to concat-over-heads followed by one (TQ, H*dv) @ (H*dv, D)).
        acc_scr[...] += jnp.dot(oh.astype(mxu_dtype), wfc_ref[h],
                                preferred_element_type=jnp.float32)

    o = acc_scr[...] + bfc_ref[...] + x_res                        # (TQ, D) f32
    inv_d = 1.0 / d_model

    # --- post-LayerNorm 1 (eps = 1e-6), fused moments ---
    mu = jnp.sum(o, axis=-1, keepdims=True) * inv_d
    ms = jnp.sum(o * o, axis=-1, keepdims=True) * inv_d
    o = (o - mu) * lax.rsqrt(ms - mu * mu + 1e-6) * g1_ref[...] + be1_ref[...]

    # --- position-wise feed forward (ReLU) with residual ---
    h1 = jnp.maximum(
        jnp.dot(o.astype(mxu_dtype), w1_ref[...],
                preferred_element_type=jnp.float32) + b1_ref[...], 0.0)
    y = (jnp.dot(h1.astype(mxu_dtype), w2_ref[...],
                 preferred_element_type=jnp.float32) + b2_ref[...] + o)

    # --- post-LayerNorm 2 (eps = 1e-6), fused moments ---
    mu2 = jnp.sum(y, axis=-1, keepdims=True) * inv_d
    ms2 = jnp.sum(y * y, axis=-1, keepdims=True) * inv_d
    y = (y - mu2) * lax.rsqrt(ms2 - mu2 * mu2 + 1e-6) * g2_ref[...] + be2_ref[...]

    out_ref[0] = y.astype(out_ref.dtype)


def _vmem_cap_bytes():
    """Physical VMEM per TensorCore; conservative 64 MiB fallback (true on v7x)."""
    try:
        return int(pltpu.get_tpu_info().vmem_capacity_bytes)
    except Exception:
        return 64 * 1024 * 1024


def encoder_layer(x, params, *, n_head, d_k, d_v, tq=None,
                  mxu_dtype=jnp.bfloat16, attn_dtype=jnp.float32,
                  approx_recip=None):
    """x: (B, L, d_model) float32.  Returns (enc_output (B, L, D) f32, attn (B, H, L, L))."""
    B, L, D = x.shape
    hdk, hdv = n_head * d_k, n_head * d_v
    F = params["w1"].shape[1]

    if approx_recip is None:
        # Approx EUP reciprocal only on the fast (bf16) path; exact divide for f32.
        approx_recip = (jnp.dtype(mxu_dtype) != jnp.dtype(jnp.float32))

    scale = 1.0 / (d_k ** 0.5)

    def heads_w(w, dh):          # (D, H*dh) -> (H, D, dh)
        return jnp.transpose(w.reshape(D, n_head, dh), (1, 0, 2))

    def heads_b(b, dh):          # (1, H*dh) -> (H, 1, dh)
        return b.reshape(n_head, dh)[:, None, :]

    # Fold 1/sqrt(d_k) into the Q weights & bias; ship matmul weights in the MXU dtype,
    # keep biases / LayerNorm params in f32 (they only feed VPU math).
    wq = (heads_w(params["wq"], d_k) * scale).astype(mxu_dtype)
    bq = heads_b(params["bq"], d_k) * scale
    wk = heads_w(params["wk"], d_k).astype(mxu_dtype)
    bk = heads_b(params["bk"], d_k)
    wv = heads_w(params["wv"], d_v).astype(mxu_dtype)
    bv = heads_b(params["bv"], d_v)
    wfc = params["wfc"].reshape(n_head, d_v, D).astype(mxu_dtype)

    ordered = [
        wq, bq, wk, bk, wv, bv,
        wfc, params["bfc"],
        params["g1"], params["be1"],
        params["w1"].astype(mxu_dtype), params["b1"],
        params["w2"].astype(mxu_dtype), params["b2"],
        params["g2"], params["be2"],
    ]

    weight_bytes = sum(int(a.size) * a.dtype.itemsize for a in ordered)
    attn_isz = jnp.dtype(attn_dtype).itemsize
    mxu_isz = jnp.dtype(mxu_dtype).itemsize

    def est_vmem(tq_):
        return int(
            2 * L * D * 4                                         # x block (double-buffered)
            + 2 * weight_bytes                                    # weights (double-buffered)
            + 2 * (tq_ * D * 4 + n_head * tq_ * L * attn_isz)     # outputs (double-buffered)
            + n_head * L * (d_k + d_v) * mxu_isz                  # K/V scratch
            + tq_ * D * 4                                         # fc accumulator scratch
        )

    cap = _vmem_cap_bytes()

    # Query-tile size: largest of (256, 128, 64) that divides L and fits the VMEM
    # budget of this chip generation; small sequences use a single tile.
    if tq is None:
        tq = L
        if L > 256:
            for cand in (256, 128, 64):
                if L % cand == 0 and est_vmem(cand) <= int(0.8 * cap):
                    tq = cand
                    break
    assert L % tq == 0, "tq must divide L"
    nq = L // tq

    # Clamp the VMEM limit to the physical capacity (v7x: 64 MiB/TC).
    vmem_limit = int(min(int(0.9 * cap), max(32 * 1024 * 1024, int(1.3 * est_vmem(tq)))))

    def full_spec(arr):
        nd = arr.ndim
        return pl.BlockSpec(arr.shape, lambda b, q, _nd=nd: (0,) * _nd)

    in_specs = [pl.BlockSpec((1, L, D), lambda b, q: (b, 0, 0))] + \
               [full_spec(a) for a in ordered]

    out_shape = (
        jax.ShapeDtypeStruct((B, L, D), jnp.float32),
        jax.ShapeDtypeStruct((B, n_head, L, L), attn_dtype),
    )
    out_specs = (
        pl.BlockSpec((1, tq, D), lambda b, q: (b, q, 0)),
        pl.BlockSpec((1, n_head, tq, L), lambda b, q: (b, 0, q, 0)),
    )

    scratch_shapes = [
        pltpu.VMEM((n_head, L, d_k), mxu_dtype),   # K, head-major, persists per batch elem
        pltpu.VMEM((n_head, L, d_v), mxu_dtype),   # V, head-major
        pltpu.VMEM((tq, D), jnp.float32),          # fc-projected attention accumulator
    ]

    flops = 2 * B * (
        L * D * (hdk + hdv)               # K, V projections
        + L * D * hdk                     # Q projection
        + n_head * L * L * (d_k + d_v)    # QK^T and P@V
        + L * hdv * D                     # output projection (fc)
        + 2 * L * D * F                   # FFN
    )
    cost = pl.CostEstimate(
        flops=int(flops),
        transcendentals=int(B * n_head * L * L),
        bytes_accessed=int(8 * B * L * D + attn_isz * B * n_head * L * L + B * weight_bytes),
    )

    kernel = functools.partial(
        _encoder_layer_kernel, n_head=n_head, d_k=d_k, d_v=d_v, tq=tq,
        mxu_dtype=mxu_dtype, approx_recip=approx_recip)

    return pl.pallas_call(
        kernel,
        out_shape=out_shape,
        grid_spec=pltpu.PrefetchScalarGridSpec(
            num_scalar_prefetch=0,
            grid=(B, nq),
            in_specs=in_specs,
            out_specs=out_specs,
            scratch_shapes=scratch_shapes,
        ),
        compiler_params=pltpu.CompilerParams(
            # Batch axis parallel (megacore); the q axis MUST stay "arbitrary"
            # (sequential) because the K/V scratch is initialized at qi == 0.
            dimension_semantics=("parallel", "arbitrary"),
            vmem_limit_bytes=vmem_limit,
        ),
        cost_estimate=cost,
    )(x, *ordered)


def _init_params(key, d_model, d_inner, n_head, d_k, d_v):
    ks = jax.random.split(key, 12)

    def linear(kw, kb, fan_in, fan_out):
        bound = 1.0 / (fan_in ** 0.5)
        w = jax.random.uniform(kw, (fan_in, fan_out), jnp.float32, -bound, bound)
        b = jax.random.uniform(kb, (1, fan_out), jnp.float32, -bound, bound)
        return w, b

    wq, bq = linear(ks[0], ks[1], d_model, n_head * d_k)
    wk, bk = linear(ks[2], ks[3], d_model, n_head * d_k)
    wv, bv = linear(ks[4], ks[5], d_model, n_head * d_v)
    wfc, bfc = linear(ks[6], ks[7], n_head * d_v, d_model)
    w1, b1 = linear(ks[8], ks[9], d_model, d_inner)
    w2, b2 = linear(ks[10], ks[11], d_inner, d_model)

    return dict(
        wq=wq, bq=bq, wk=wk, bk=bk, wv=wv, bv=bv, wfc=wfc, bfc=bfc,
        g1=jnp.ones((1, d_model), jnp.float32), be1=jnp.zeros((1, d_model), jnp.float32),
        w1=w1, b1=b1, w2=w2, b2=b2,
        g2=jnp.ones((1, d_model), jnp.float32), be2=jnp.zeros((1, d_model), jnp.float32),
    )


def _reference(x, p, n_head, d_k, d_v):
    """Plain-JAX reference mirroring the PyTorch forward (post-norm, softmax, no dropout)."""
    B, L, D = x.shape
    residual = x
    q = (x @ p["wq"] + p["bq"]).reshape(B, L, n_head, d_k).transpose(0, 2, 1, 3)
    k = (x @ p["wk"] + p["bk"]).reshape(B, L, n_head, d_k).transpose(0, 2, 1, 3)
    v = (x @ p["wv"] + p["bv"]).reshape(B, L, n_head, d_v).transpose(0, 2, 1, 3)
    attn = jnp.einsum("bhqd,bhkd->bhqk", q / (d_k ** 0.5), k)
    attn = jax.nn.softmax(attn, axis=-1)
    o = jnp.einsum("bhqk,bhkd->bhqd", attn, v).transpose(0, 2, 1, 3).reshape(B, L, n_head * d_v)
    o = o @ p["wfc"] + p["bfc"] + residual
    mu = o.mean(-1, keepdims=True)
    var = ((o - mu) ** 2).mean(-1, keepdims=True)
    o = (o - mu) / jnp.sqrt(var + 1e-6) * p["g1"] + p["be1"]
    res2 = o
    h = jnp.maximum(o @ p["w1"] + p["b1"], 0.0)
    y = h @ p["w2"] + p["b2"] + res2
    mu2 = y.mean(-1, keepdims=True)
    var2 = ((y - mu2) ** 2).mean(-1, keepdims=True)
    y = (y - mu2) / jnp.sqrt(var2 + 1e-6) * p["g2"] + p["be2"]
    return y, attn


if __name__ == "__main__":
    # Small shapes consistent with the module.
    B, L = 2, 8
    d_model, d_inner = 32, 64
    n_head, d_k, d_v = 2, 8, 8

    key = jax.random.PRNGKey(0)
    kx, kp = jax.random.split(key)
    x = jax.random.normal(kx, (B, L, d_model), jnp.float32)
    params = _init_params(kp, d_model, d_inner, n_head, d_k, d_v)

    ref_out, ref_attn = _reference(x, params, n_head, d_k, d_v)

    # Exact (f32-operand) path: tight tolerance.
    out32, attn32 = encoder_layer(x, params, n_head=n_head, d_k=d_k, d_v=d_v,
                                  mxu_dtype=jnp.float32)
    out32 = jax.block_until_ready(out32)
    attn32 = jax.block_until_ready(attn32)
    assert jnp.allclose(out32, ref_out, rtol=1e-4, atol=1e-4), "f32 enc_output mismatch"
    assert jnp.allclose(attn32, ref_attn, rtol=1e-4, atol=1e-4), "f32 attn mismatch"

    # Fast path (default): bf16 MXU operands, f32 accumulation, approx reciprocal.
    out_bf, attn_bf = encoder_layer(x, params, n_head=n_head, d_k=d_k, d_v=d_v)
    out_bf = jax.block_until_ready(out_bf)
    attn_bf = jax.block_until_ready(attn_bf)
    assert jnp.allclose(out_bf, ref_out, rtol=5e-2, atol=5e-2), "bf16 enc_output mismatch"
    assert jnp.allclose(attn_bf, ref_attn, rtol=5e-2, atol=5e-2), "bf16 attn mismatch"

    print("KERNEL_OK")
</pallas_src>

<mosaic_0001>
module attributes {stable_mosaic.version = 11 : i64} {
  func.func @_encoder_layer_kernel(%arg0: i32, %arg1: i32, %arg2: memref<1x8x32xf32, #tpu.memory_space<vmem>>, %arg3: memref<2x32x8xf32, #tpu.memory_space<vmem>>, %arg4: memref<2x1x8xf32, #tpu.memory_space<vmem>>, %arg5: memref<2x32x8xf32, #tpu.memory_space<vmem>>, %arg6: memref<2x1x8xf32, #tpu.memory_space<vmem>>, %arg7: memref<2x32x8xf32, #tpu.memory_space<vmem>>, %arg8: memref<2x1x8xf32, #tpu.memory_space<vmem>>, %arg9: memref<2x8x32xf32, #tpu.memory_space<vmem>>, %arg10: memref<1x32xf32, #tpu.memory_space<vmem>>, %arg11: memref<1x32xf32, #tpu.memory_space<vmem>>, %arg12: memref<1x32xf32, #tpu.memory_space<vmem>>, %arg13: memref<32x64xf32, #tpu.memory_space<vmem>>, %arg14: memref<1x64xf32, #tpu.memory_space<vmem>>, %arg15: memref<64x32xf32, #tpu.memory_space<vmem>>, %arg16: memref<1x32xf32, #tpu.memory_space<vmem>>, %arg17: memref<1x32xf32, #tpu.memory_space<vmem>>, %arg18: memref<1x32xf32, #tpu.memory_space<vmem>>, %arg19: memref<1x8x32xf32, #tpu.memory_space<vmem>>, %arg20: memref<1x2x8x8xf32, #tpu.memory_space<vmem>>, %arg21: memref<2x8x8xf32, #tpu.memory_space<vmem>>, %arg22: memref<2x8x8xf32, #tpu.memory_space<vmem>>, %arg23: memref<8x32xf32, #tpu.memory_space<vmem>>) attributes {dimension_semantics = [#tpu.dimension_semantics<parallel>, #tpu.dimension_semantics<arbitrary>], iteration_bounds = array<i64: 2, 1>, scalar_prefetch = 0 : i64, scratch_operands = 3 : i64, tpu.core_type = #tpu.core_type<tc>, window_params = [{transform_indices = @transform_0, window_bounds = array<i64: 1, 8, 32>}, {pipeline_mode = #tpu.pipeline_mode<synchronous>, transform_indices = @transform_1, window_bounds = array<i64: 2, 32, 8>}, {pipeline_mode = #tpu.pipeline_mode<synchronous>, transform_indices = @transform_2, window_bounds = array<i64: 2, 1, 8>}, {pipeline_mode = #tpu.pipeline_mode<synchronous>, transform_indices = @transform_3, window_bounds = array<i64: 2, 32, 8>}, {pipeline_mode = #tpu.pipeline_mode<synchronous>, transform_indices = @transform_4, window_bounds = array<i64: 2, 1, 8>}, {pipeline_mode = #tpu.pipeline_mode<synchronous>, transform_indices = @transform_5, window_bounds = array<i64: 2, 32, 8>}, {pipeline_mode = #tpu.pipeline_mode<synchronous>, transform_indices = @transform_6, window_bounds = array<i64: 2, 1, 8>}, {pipeline_mode = #tpu.pipeline_mode<synchronous>, transform_indices = @transform_7, window_bounds = array<i64: 2, 8, 32>}, {pipeline_mode = #tpu.pipeline_mode<synchronous>, transform_indices = @transform_8, window_bounds = array<i64: 1, 32>}, {pipeline_mode = #tpu.pipeline_mode<synchronous>, transform_indices = @transform_9, window_bounds = array<i64: 1, 32>}, {pipeline_mode = #tpu.pipeline_mode<synchronous>, transform_indices = @transform_10, window_bounds = array<i64: 1, 32>}, {pipeline_mode = #tpu.pipeline_mode<synchronous>, transform_indices = @transform_11, window_bounds = array<i64: 32, 64>}, {pipeline_mode = #tpu.pipeline_mode<synchronous>, transform_indices = @transform_12, window_bounds = array<i64: 1, 64>}, {pipeline_mode = #tpu.pipeline_mode<synchronous>, transform_indices = @transform_13, window_bounds = array<i64: 64, 32>}, {pipeline_mode = #tpu.pipeline_mode<synchronous>, transform_indices = @transform_14, window_bounds = array<i64: 1, 32>}, {pipeline_mode = #tpu.pipeline_mode<synchronous>, transform_indices = @transform_15, window_bounds = array<i64: 1, 32>}, {pipeline_mode = #tpu.pipeline_mode<synchronous>, transform_indices = @transform_16, window_bounds = array<i64: 1, 32>}, {transform_indices = @transform_17, window_bounds = array<i64: 1, 8, 32>}, {transform_indices = @transform_18, window_bounds = array<i64: 1, 2, 8, 8>}]} {
    %c0_i32 = arith.constant 0 : i32
    %0 = arith.cmpi eq, %arg1, %c0_i32 : i32
    %1 = arith.extui %0 : i1 to i32
    %c0_i32_0 = arith.constant 0 : i32
    %2 = arith.cmpi ne, %1, %c0_i32_0 : i32
    scf.if %2 {
      %c0_42 = arith.constant 0 : index
      %c0_43 = arith.constant 0 : index
      %c0_44 = arith.constant 0 : index
      %80 = vector.load %arg2[%c0_42, %c0_43, %c0_44] : memref<1x8x32xf32, #tpu.memory_space<vmem>>, vector<1x8x32xf32>
      %81 = vector.shape_cast %80 : vector<1x8x32xf32> to vector<8x32xf32>
      %c0_i32_45 = arith.constant 0 : i32
      %c2_i32_46 = arith.constant 2 : i32
      %82 = arith.addi %c0_i32_45, %c2_i32_46 : i32
      %c1_i32_47 = arith.constant 1 : i32
      scf.for %arg24 = %c0_i32_45 to %82 step %c1_i32_47  : i32 {
        %c1_i32_49 = arith.constant 1 : i32
        %83 = arith.muli %arg24, %c1_i32_49 : i32
        %c0_i32_50 = arith.constant 0 : i32
        %84 = arith.addi %c0_i32_50, %83 : i32
        %85 = arith.index_cast %84 : i32 to index
        %c0_51 = arith.constant 0 : index
        %c0_52 = arith.constant 0 : index
        %86 = vector.load %arg5[%85, %c0_51, %c0_52] : memref<2x32x8xf32, #tpu.memory_space<vmem>>, vector<1x32x8xf32>
        %87 = vector.shape_cast %86 : vector<1x32x8xf32> to vector<32x8xf32>
        %cst_53 = arith.constant dense<0.000000e+00> : vector<8x8xf32>
        %88 = tpu.matmul %81, %87, %cst_53 {dimension_numbers = #tpu.dot_dimension_numbers<[1], [0], [0], [1], [0, 0, 1, 1], [], []>} : vector<8x32xf32>, vector<32x8xf32>, vector<8x8xf32> -> vector<8x8xf32>
        %89 = arith.index_cast %84 : i32 to index
        %c0_54 = arith.constant 0 : index
        %c0_55 = arith.constant 0 : index
        %90 = vector.load %arg6[%89, %c0_54, %c0_55] : memref<2x1x8xf32, #tpu.memory_space<vmem>>, vector<1x1x8xf32>
        %91 = vector.shape_cast %90 : vector<1x1x8xf32> to vector<1x8xf32>
        %92 = vector.broadcast %91 : vector<1x8xf32> to vector<8x8xf32>
        %93 = arith.addf %88, %92 : vector<8x8xf32>
        %94 = arith.index_cast %84 : i32 to index
        %c0_56 = arith.constant 0 : index
        %c0_57 = arith.constant 0 : index
        %95 = vector.load %arg21[%94, %c0_56, %c0_57] : memref<2x8x8xf32, #tpu.memory_space<vmem>>, vector<1x8x8xf32>
        %96 = vector.shape_cast %95 : vector<1x8x8xf32> to vector<8x8xf32>
        %97 = vector.shape_cast %93 : vector<8x8xf32> to vector<1x8x8xf32>
        tpu.vector_store %arg21[%94, %c0_56, %c0_57], %97 {strides = array<i32>} : memref<2x8x8xf32, #tpu.memory_space<vmem>>, vector<1x8x8xf32>,
        %98 = arith.index_cast %84 : i32 to index
        %c0_58 = arith.constant 0 : index
        %c0_59 = arith.constant 0 : index
        %99 = vector.load %arg7[%98, %c0_58, %c0_59] : memref<2x32x8xf32, #tpu.memory_space<vmem>>, vector<1x32x8xf32>
        %100 = vector.shape_cast %99 : vector<1x32x8xf32> to vector<32x8xf32>
        %cst_60 = arith.constant dense<0.000000e+00> : vector<8x8xf32>
        %101 = tpu.matmul %81, %100, %cst_60 {dimension_numbers = #tpu.dot_dimension_numbers<[1], [0], [0], [1], [0, 0, 1, 1], [], []>} : vector<8x32xf32>, vector<32x8xf32>, vector<8x8xf32> -> vector<8x8xf32>
        %102 = arith.index_cast %84 : i32 to index
        %c0_61 = arith.constant 0 : index
        %c0_62 = arith.constant 0 : index
        %103 = vector.load %arg8[%102, %c0_61, %c0_62] : memref<2x1x8xf32, #tpu.memory_space<vmem>>, vector<1x1x8xf32>
        %104 = vector.shape_cast %103 : vector<1x1x8xf32> to vector<1x8xf32>
        %105 = vector.broadcast %104 : vector<1x8xf32> to vector<8x8xf32>
        %106 = arith.addf %101, %105 : vector<8x8xf32>
        %107 = arith.index_cast %84 : i32 to index
        %c0_63 = arith.constant 0 : index
        %c0_64 = arith.constant 0 : index
        %108 = vector.load %arg22[%107, %c0_63, %c0_64] : memref<2x8x8xf32, #tpu.memory_space<vmem>>, vector<1x8x8xf32>
        %109 = vector.shape_cast %108 : vector<1x8x8xf32> to vector<8x8xf32>
        %110 = vector.shape_cast %106 : vector<8x8xf32> to vector<1x8x8xf32>
        tpu.vector_store %arg22[%107, %c0_63, %c0_64], %110 {strides = array<i32>} : memref<2x8x8xf32, #tpu.memory_space<vmem>>, vector<1x8x8xf32>,
      }
      %c2_i32_48 = arith.constant 2 : i32
    } else {
    }
    %c8_i32 = arith.constant 8 : i32
    %3 = arith.muli %arg1, %c8_i32 : i32
    %4 = tpu.assume_multiple %3, 8 : i32
    %c0 = arith.constant 0 : index
    %5 = arith.index_cast %4 : i32 to index
    %c0_1 = arith.constant 0 : index
    %6 = vector.load %arg2[%c0, %5, %c0_1] : memref<1x8x32xf32, #tpu.memory_space<vmem>>, vector<1x8x32xf32>
    %7 = vector.shape_cast %6 : vector<1x8x32xf32> to vector<8x32xf32>
    %cst = arith.constant 0.000000e+00 : f32
    %8 = vector.broadcast %cst : f32 to vector<8x32xf32>
    %c0_2 = arith.constant 0 : index
    %c0_3 = arith.constant 0 : index
    %9 = vector.load %arg23[%c0_2, %c0_3] : memref<8x32xf32, #tpu.memory_space<vmem>>, vector<8x32xf32>
    tpu.vector_store %arg23[%c0_2, %c0_3], %8 {strides = array<i32>} : memref<8x32xf32, #tpu.memory_space<vmem>>, vector<8x32xf32>,
    %c0_i32_4 = arith.constant 0 : i32
    %c2_i32 = arith.constant 2 : i32
    %10 = arith.addi %c0_i32_4, %c2_i32 : i32
    %c1_i32 = arith.constant 1 : i32
    scf.for %arg24 = %c0_i32_4 to %10 step %c1_i32  : i32 {
      %c1_i32_42 = arith.constant 1 : i32
      %80 = arith.muli %arg24, %c1_i32_42 : i32
      %c0_i32_43 = arith.constant 0 : i32
      %81 = arith.addi %c0_i32_43, %80 : i32
      %82 = arith.index_cast %81 : i32 to index
      %c0_44 = arith.constant 0 : index
      %c0_45 = arith.constant 0 : index
      %83 = vector.load %arg3[%82, %c0_44, %c0_45] : memref<2x32x8xf32, #tpu.memory_space<vmem>>, vector<1x32x8xf32>
      %84 = vector.shape_cast %83 : vector<1x32x8xf32> to vector<32x8xf32>
      %cst_46 = arith.constant dense<0.000000e+00> : vector<8x8xf32>
      %85 = tpu.matmul %7, %84, %cst_46 {dimension_numbers = #tpu.dot_dimension_numbers<[1], [0], [0], [1], [0, 0, 1, 1], [], []>} : vector<8x32xf32>, vector<32x8xf32>, vector<8x8xf32> -> vector<8x8xf32>
      %86 = arith.index_cast %81 : i32 to index
      %c0_47 = arith.constant 0 : index
      %c0_48 = arith.constant 0 : index
      %87 = vector.load %arg4[%86, %c0_47, %c0_48] : memref<2x1x8xf32, #tpu.memory_space<vmem>>, vector<1x1x8xf32>
      %88 = vector.shape_cast %87 : vector<1x1x8xf32> to vector<1x8xf32>
      %89 = vector.broadcast %88 : vector<1x8xf32> to vector<8x8xf32>
      %90 = arith.addf %85, %89 : vector<8x8xf32>
      %91 = arith.index_cast %81 : i32 to index
      %c0_49 = arith.constant 0 : index
      %c0_50 = arith.constant 0 : index
      %92 = vector.load %arg21[%91, %c0_49, %c0_50] : memref<2x8x8xf32, #tpu.memory_space<vmem>>, vector<1x8x8xf32>
      %93 = vector.shape_cast %92 : vector<1x8x8xf32> to vector<8x8xf32>
      %94 = arith.index_cast %81 : i32 to index
      %c0_51 = arith.constant 0 : index
      %c0_52 = arith.constant 0 : index
      %95 = vector.load %arg22[%94, %c0_51, %c0_52] : memref<2x8x8xf32, #tpu.memory_space<vmem>>, vector<1x8x8xf32>
      %96 = vector.shape_cast %95 : vector<1x8x8xf32> to vector<8x8xf32>
      %cst_53 = arith.constant dense<0.000000e+00> : vector<8x8xf32>
      %97 = tpu.matmul %90, %93, %cst_53 {dimension_numbers = #tpu.dot_dimension_numbers<[1], [1], [0], [0], [0, 0, 1, 0], [], []>} : vector<8x8xf32>, vector<8x8xf32>, vector<8x8xf32> -> vector<8x8xf32>
      %cst_54 = arith.constant dense<0xFF800000> : vector<8xf32>
      %98 = vector.multi_reduction <maximumf>, %97, %cst_54 [1] : vector<8x8xf32> to vector<8xf32>
      %99 = vector.shape_cast %98 : vector<8xf32> to vector<8x1xf32>
      %100 = vector.broadcast %99 : vector<8x1xf32> to vector<8x8xf32>
      %101 = arith.subf %97, %100 : vector<8x8xf32>
      %102 = math.exp %101 : vector<8x8xf32>
      %cst_55 = arith.constant dense<0.000000e+00> : vector<8xf32>
      %103 = vector.multi_reduction <add>, %102, %cst_55 [1] : vector<8x8xf32> to vector<8xf32>
      %104 = vector.shape_cast %103 : vector<8xf32> to vector<8x1xf32>
      %105 = tpu.reciprocal %104 : vector<8x1xf32> -> vector<8x1xf32>
      %106 = vector.broadcast %105 : vector<8x1xf32> to vector<8x8xf32>
      %107 = arith.mulf %102, %106 : vector<8x8xf32>
      %c0_56 = arith.constant 0 : index
      %108 = arith.index_cast %81 : i32 to index
      %c0_57 = arith.constant 0 : index
      %c0_58 = arith.constant 0 : index
      %109 = vector.load %arg20[%c0_56, %108, %c0_57, %c0_58] : memref<1x2x8x8xf32, #tpu.memory_space<vmem>>, vector<1x1x8x8xf32>
      %110 = vector.shape_cast %109 : vector<1x1x8x8xf32> to vector<8x8xf32>
      %111 = vector.shape_cast %107 : vector<8x8xf32> to vector<1x1x8x8xf32>
      tpu.vector_store %arg20[%c0_56, %108, %c0_57, %c0_58], %111 {strides = array<i32>} : memref<1x2x8x8xf32, #tpu.memory_space<vmem>>, vector<1x1x8x8xf32>,
      %cst_59 = arith.constant dense<0.000000e+00> : vector<8x8xf32>
      %112 = tpu.matmul %107, %96, %cst_59 {dimension_numbers = #tpu.dot_dimension_numbers<[1], [0], [0], [1], [0, 0, 1, 1], [], []>} : vector<8x8xf32>, vector<8x8xf32>, vector<8x8xf32> -> vector<8x8xf32>
      %c0_60 = arith.constant 0 : index
      %c0_61 = arith.constant 0 : index
      %113 = vector.load %arg23[%c0_60, %c0_61] : memref<8x32xf32, #tpu.memory_space<vmem>>, vector<8x32xf32>
      %114 = arith.index_cast %81 : i32 to index
      %c0_62 = arith.constant 0 : index
      %c0_63 = arith.constant 0 : index
      %115 = vector.load %arg9[%114, %c0_62, %c0_63] : memref<2x8x32xf32, #tpu.memory_space<vmem>>, vector<1x8x32xf32>
      %116 = vector.shape_cast %115 : vector<1x8x32xf32> to vector<8x32xf32>
      %cst_64 = arith.constant dense<0.000000e+00> : vector<8x32xf32>
      %117 = tpu.matmul %112, %116, %cst_64 {dimension_numbers = #tpu.dot_dimension_numbers<[1], [0], [0], [1], [0, 0, 1, 1], [], []>} : vector<8x8xf32>, vector<8x32xf32>, vector<8x32xf32> -> vector<8x32xf32>
      %118 = arith.addf %113, %117 : vector<8x32xf32>
      %c0_65 = arith.constant 0 : index
      %c0_66 = arith.constant 0 : index
      %119 = vector.load %arg23[%c0_65, %c0_66] : memref<8x32xf32, #tpu.memory_space<vmem>>, vector<8x32xf32>
      tpu.vector_store %arg23[%c0_65, %c0_66], %118 {strides = array<i32>} : memref<8x32xf32, #tpu.memory_space<vmem>>, vector<8x32xf32>,
    }
    %c2_i32_5 = arith.constant 2 : i32
    %c0_6 = arith.constant 0 : index
    %c0_7 = arith.constant 0 : index
    %11 = vector.load %arg23[%c0_6, %c0_7] : memref<8x32xf32, #tpu.memory_space<vmem>>, vector<8x32xf32>
    %c0_8 = arith.constant 0 : index
    %c0_9 = arith.constant 0 : index
    %12 = vector.load %arg10[%c0_8, %c0_9] : memref<1x32xf32, #tpu.memory_space<vmem>>, vector<1x32xf32>
    %13 = vector.broadcast %12 : vector<1x32xf32> to vector<8x32xf32>
    %14 = arith.addf %11, %13 : vector<8x32xf32>
    %15 = arith.addf %14, %7 : vector<8x32xf32>
    %cst_10 = arith.constant dense<0.000000e+00> : vector<8xf32>
    %16 = vector.multi_reduction <add>, %15, %cst_10 [1] : vector<8x32xf32> to vector<8xf32>
    %17 = vector.shape_cast %16 : vector<8xf32> to vector<8x1xf32>
    %cst_11 = arith.constant 3.125000e-02 : f32
    %18 = vector.broadcast %cst_11 : f32 to vector<8x1xf32>
    %19 = arith.mulf %17, %18 : vector<8x1xf32>
    %20 = arith.mulf %15, %15 : vector<8x32xf32>
    %cst_12 = arith.constant dense<0.000000e+00> : vector<8xf32>
    %21 = vector.multi_reduction <add>, %20, %cst_12 [1] : vector<8x32xf32> to vector<8xf32>
    %22 = vector.shape_cast %21 : vector<8xf32> to vector<8x1xf32>
    %cst_13 = arith.constant 3.125000e-02 : f32
    %23 = vector.broadcast %cst_13 : f32 to vector<8x1xf32>
    %24 = arith.mulf %22, %23 : vector<8x1xf32>
    %25 = vector.broadcast %19 : vector<8x1xf32> to vector<8x32xf32>
    %26 = arith.subf %15, %25 : vector<8x32xf32>
    %27 = arith.mulf %19, %19 : vector<8x1xf32>
    %28 = arith.subf %24, %27 : vector<8x1xf32>
    %cst_14 = arith.constant 9.99999997E-7 : f32
    %29 = vector.broadcast %cst_14 : f32 to vector<8x1xf32>
    %30 = arith.addf %28, %29 : vector<8x1xf32>
    %31 = math.rsqrt %30 : vector<8x1xf32>
    %32 = vector.broadcast %31 : vector<8x1xf32> to vector<8x32xf32>
    %33 = arith.mulf %26, %32 : vector<8x32xf32>
    %c0_15 = arith.constant 0 : index
    %c0_16 = arith.constant 0 : index
    %34 = vector.load %arg11[%c0_15, %c0_16] : memref<1x32xf32, #tpu.memory_space<vmem>>, vector<1x32xf32>
    %35 = vector.broadcast %34 : vector<1x32xf32> to vector<8x32xf32>
    %36 = arith.mulf %33, %35 : vector<8x32xf32>
    %c0_17 = arith.constant 0 : index
    %c0_18 = arith.constant 0 : index
    %37 = vector.load %arg12[%c0_17, %c0_18] : memref<1x32xf32, #tpu.memory_space<vmem>>, vector<1x32xf32>
    %38 = vector.broadcast %37 : vector<1x32xf32> to vector<8x32xf32>
    %39 = arith.addf %36, %38 : vector<8x32xf32>
    %c0_19 = arith.constant 0 : index
    %c0_20 = arith.constant 0 : index
    %40 = vector.load %arg13[%c0_19, %c0_20] : memref<32x64xf32, #tpu.memory_space<vmem>>, vector<32x64xf32>
    %cst_21 = arith.constant dense<0.000000e+00> : vector<8x64xf32>
    %41 = tpu.matmul %39, %40, %cst_21 {dimension_numbers = #tpu.dot_dimension_numbers<[1], [0], [0], [1], [0, 0, 1, 1], [], []>} : vector<8x32xf32>, vector<32x64xf32>, vector<8x64xf32> -> vector<8x64xf32>
    %c0_22 = arith.constant 0 : index
    %c0_23 = arith.constant 0 : index
    %42 = vector.load %arg14[%c0_22, %c0_23] : memref<1x64xf32, #tpu.memory_space<vmem>>, vector<1x64xf32>
    %43 = vector.broadcast %42 : vector<1x64xf32> to vector<8x64xf32>
    %44 = arith.addf %41, %43 : vector<8x64xf32>
    %cst_24 = arith.constant 0.000000e+00 : f32
    %45 = vector.broadcast %cst_24 : f32 to vector<8x64xf32>
    %46 = arith.maximumf %44, %45 : vector<8x64xf32>
    %c0_25 = arith.constant 0 : index
    %c0_26 = arith.constant 0 : index
    %47 = vector.load %arg15[%c0_25, %c0_26] : memref<64x32xf32, #tpu.memory_space<vmem>>, vector<64x32xf32>
    %cst_27 = arith.constant dense<0.000000e+00> : vector<8x32xf32>
    %48 = tpu.matmul %46, %47, %cst_27 {dimension_numbers = #tpu.dot_dimension_numbers<[1], [0], [0], [1], [0, 0, 1, 1], [], []>} : vector<8x64xf32>, vector<64x32xf32>, vector<8x32xf32> -> vector<8x32xf32>
    %c0_28 = arith.constant 0 : index
    %c0_29 = arith.constant 0 : index
    %49 = vector.load %arg16[%c0_28, %c0_29] : memref<1x32xf32, #tpu.memory_space<vmem>>, vector<1x32xf32>
    %50 = vector.broadcast %49 : vector<1x32xf32> to vector<8x32xf32>
    %51 = arith.addf %48, %50 : vector<8x32xf32>
    %52 = arith.addf %51, %39 : vector<8x32xf32>
    %cst_30 = arith.constant dense<0.000000e+00> : vector<8xf32>
    %53 = vector.multi_reduction <add>, %52, %cst_30 [1] : vector<8x32xf32> to vector<8xf32>
    %54 = vector.shape_cast %53 : vector<8xf32> to vector<8x1xf32>
    %cst_31 = arith.constant 3.125000e-02 : f32
    %55 = vector.broadcast %cst_31 : f32 to vector<8x1xf32>
    %56 = arith.mulf %54, %55 : vector<8x1xf32>
    %57 = arith.mulf %52, %52 : vector<8x32xf32>
    %cst_32 = arith.constant dense<0.000000e+00> : vector<8xf32>
    %58 = vector.multi_reduction <add>, %57, %cst_32 [1] : vector<8x32xf32> to vector<8xf32>
    %59 = vector.shape_cast %58 : vector<8xf32> to vector<8x1xf32>
    %cst_33 = arith.constant 3.125000e-02 : f32
    %60 = vector.broadcast %cst_33 : f32 to vector<8x1xf32>
    %61 = arith.mulf %59, %60 : vector<8x1xf32>
    %62 = vector.broadcast %56 : vector<8x1xf32> to vector<8x32xf32>
    %63 = arith.subf %52, %62 : vector<8x32xf32>
    %64 = arith.mulf %56, %56 : vector<8x1xf32>
    %65 = arith.subf %61, %64 : vector<8x1xf32>
    %cst_34 = arith.constant 9.99999997E-7 : f32
    %66 = vector.broadcast %cst_34 : f32 to vector<8x1xf32>
    %67 = arith.addf %65, %66 : vector<8x1xf32>
    %68 = math.rsqrt %67 : vector<8x1xf32>
    %69 = vector.broadcast %68 : vector<8x1xf32> to vector<8x32xf32>
    %70 = arith.mulf %63, %69 : vector<8x32xf32>
    %c0_35 = arith.constant 0 : index
    %c0_36 = arith.constant 0 : index
    %71 = vector.load %arg17[%c0_35, %c0_36] : memref<1x32xf32, #tpu.memory_space<vmem>>, vector<1x32xf32>
    %72 = vector.broadcast %71 : vector<1x32xf32> to vector<8x32xf32>
    %73 = arith.mulf %70, %72 : vector<8x32xf32>
    %c0_37 = arith.constant 0 : index
    %c0_38 = arith.constant 0 : index
    %74 = vector.load %arg18[%c0_37, %c0_38] : memref<1x32xf32, #tpu.memory_space<vmem>>, vector<1x32xf32>
    %75 = vector.broadcast %74 : vector<1x32xf32> to vector<8x32xf32>
    %76 = arith.addf %73, %75 : vector<8x32xf32>
    %c0_39 = arith.constant 0 : index
    %c0_40 = arith.constant 0 : index
    %c0_41 = arith.constant 0 : index
    %77 = vector.load %arg19[%c0_39, %c0_40, %c0_41] : memref<1x8x32xf32, #tpu.memory_space<vmem>>, vector<1x8x32xf32>
    %78 = vector.shape_cast %77 : vector<1x8x32xf32> to vector<8x32xf32>
    %79 = vector.shape_cast %76 : vector<8x32xf32> to vector<1x8x32xf32>
    tpu.vector_store %arg19[%c0_39, %c0_40, %c0_41], %79 {strides = array<i32>} : memref<1x8x32xf32, #tpu.memory_space<vmem>>, vector<1x8x32xf32>,
    return
  }
  func.func @transform_0(%arg0: i32, %arg1: i32) -> (i32, i32, i32) {
    %c0_i32 = arith.constant 0 : i32
    %c0_i32_0 = arith.constant 0 : i32
    %c0_i32_1 = arith.constant 0 : i32
    return %arg0, %c0_i32, %c0_i32_0 : i32, i32, i32
  }
  func.func @transform_1(%arg0: i32, %arg1: i32) -> (i32, i32, i32) {
    %c0_i32 = arith.constant 0 : i32
    %c0_i32_0 = arith.constant 0 : i32
    %c0_i32_1 = arith.constant 0 : i32
    %c0_i32_2 = arith.constant 0 : i32
    return %c0_i32, %c0_i32_0, %c0_i32_1 : i32, i32, i32
  }
  func.func @transform_2(%arg0: i32, %arg1: i32) -> (i32, i32, i32) {
    %c0_i32 = arith.constant 0 : i32
    %c0_i32_0 = arith.constant 0 : i32
    %c0_i32_1 = arith.constant 0 : i32
    %c0_i32_2 = arith.constant 0 : i32
    return %c0_i32, %c0_i32_0, %c0_i32_1 : i32, i32, i32
  }
  func.func @transform_3(%arg0: i32, %arg1: i32) -> (i32, i32, i32) {
    %c0_i32 = arith.constant 0 : i32
    %c0_i32_0 = arith.constant 0 : i32
    %c0_i32_1 = arith.constant 0 : i32
    %c0_i32_2 = arith.constant 0 : i32
    return %c0_i32, %c0_i32_0, %c0_i32_1 : i32, i32, i32
  }
  func.func @transform_4(%arg0: i32, %arg1: i32) -> (i32, i32, i32) {
    %c0_i32 = arith.constant 0 : i32
    %c0_i32_0 = arith.constant 0 : i32
    %c0_i32_1 = arith.constant 0 : i32
    %c0_i32_2 = arith.constant 0 : i32
    return %c0_i32, %c0_i32_0, %c0_i32_1 : i32, i32, i32
  }
  func.func @transform_5(%arg0: i32, %arg1: i32) -> (i32, i32, i32) {
    %c0_i32 = arith.constant 0 : i32
    %c0_i32_0 = arith.constant 0 : i32
    %c0_i32_1 = arith.constant 0 : i32
    %c0_i32_2 = arith.constant 0 : i32
    return %c0_i32, %c0_i32_0, %c0_i32_1 : i32, i32, i32
  }
  func.func @transform_6(%arg0: i32, %arg1: i32) -> (i32, i32, i32) {
    %c0_i32 = arith.constant 0 : i32
    %c0_i32_0 = arith.constant 0 : i32
    %c0_i32_1 = arith.constant 0 : i32
    %c0_i32_2 = arith.constant 0 : i32
    return %c0_i32, %c0_i32_0, %c0_i32_1 : i32, i32, i32
  }
  func.func @transform_7(%arg0: i32, %arg1: i32) -> (i32, i32, i32) {
    %c0_i32 = arith.constant 0 : i32
    %c0_i32_0 = arith.constant 0 : i32
    %c0_i32_1 = arith.constant 0 : i32
    %c0_i32_2 = arith.constant 0 : i32
    return %c0_i32, %c0_i32_0, %c0_i32_1 : i32, i32, i32
  }
  func.func @transform_8(%arg0: i32, %arg1: i32) -> (i32, i32) {
    %c0_i32 = arith.constant 0 : i32
    %c0_i32_0 = arith.constant 0 : i32
    %c0_i32_1 = arith.constant 0 : i32
    return %c0_i32, %c0_i32_0 : i32, i32
  }
  func.func @transform_9(%arg0: i32, %arg1: i32) -> (i32, i32) {
    %c0_i32 = arith.constant 0 : i32
    %c0_i32_0 = arith.constant 0 : i32
    %c0_i32_1 = arith.constant 0 : i32
    return %c0_i32, %c0_i32_0 : i32, i32
  }
  func.func @transform_10(%arg0: i32, %arg1: i32) -> (i32, i32) {
    %c0_i32 = arith.constant 0 : i32
    %c0_i32_0 = arith.constant 0 : i32
    %c0_i32_1 = arith.constant 0 : i32
    return %c0_i32, %c0_i32_0 : i32, i32
  }
  func.func @transform_11(%arg0: i32, %arg1: i32) -> (i32, i32) {
    %c0_i32 = arith.constant 0 : i32
    %c0_i32_0 = arith.constant 0 : i32
    %c0_i32_1 = arith.constant 0 : i32
    return %c0_i32, %c0_i32_0 : i32, i32
  }
  func.func @transform_12(%arg0: i32, %arg1: i32) -> (i32, i32) {
    %c0_i32 = arith.constant 0 : i32
    %c0_i32_0 = arith.constant 0 : i32
    %c0_i32_1 = arith.constant 0 : i32
    return %c0_i32, %c0_i32_0 : i32, i32
  }
  func.func @transform_13(%arg0: i32, %arg1: i32) -> (i32, i32) {
    %c0_i32 = arith.constant 0 : i32
    %c0_i32_0 = arith.constant 0 : i32
    %c0_i32_1 = arith.constant 0 : i32
    return %c0_i32, %c0_i32_0 : i32, i32
  }
  func.func @transform_14(%arg0: i32, %arg1: i32) -> (i32, i32) {
    %c0_i32 = arith.constant 0 : i32
    %c0_i32_0 = arith.constant 0 : i32
    %c0_i32_1 = arith.constant 0 : i32
    return %c0_i32, %c0_i32_0 : i32, i32
  }
  func.func @transform_15(%arg0: i32, %arg1: i32) -> (i32, i32) {
    %c0_i32 = arith.constant 0 : i32
    %c0_i32_0 = arith.constant 0 : i32
    %c0_i32_1 = arith.constant 0 : i32
    return %c0_i32, %c0_i32_0 : i32, i32
  }
  func.func @transform_16(%arg0: i32, %arg1: i32) -> (i32, i32) {
    %c0_i32 = arith.constant 0 : i32
    %c0_i32_0 = arith.constant 0 : i32
    %c0_i32_1 = arith.constant 0 : i32
    return %c0_i32, %c0_i32_0 : i32, i32
  }
  func.func @transform_17(%arg0: i32, %arg1: i32) -> (i32, i32, i32) {
    %c0_i32 = arith.constant 0 : i32
    %c0_i32_0 = arith.constant 0 : i32
    return %arg0, %arg1, %c0_i32 : i32, i32, i32
  }
  func.func @transform_18(%arg0: i32, %arg1: i32) -> (i32, i32, i32, i32) {
    %c0_i32 = arith.constant 0 : i32
    %c0_i32_0 = arith.constant 0 : i32
    %c0_i32_1 = arith.constant 0 : i32
    return %arg0, %c0_i32, %arg1, %c0_i32_0 : i32, i32, i32, i32
  }
}

</mosaic_0001>

<llo_original>
// kernel: tpu_custom_call.1
$region0: #{tpu_custom_call.1}
  #allocation0 [shape = 'u32[]', space=smem, size = 0x4, offset = 0x4, fixed_abs, tag = 'smem constant byte address 0x4 - core index']
  #allocation1 [shape = 'u32[72,128]{1,0:T(1,128)}', space=vmem, size = 0x9000, scoped, tag = 'internal scratch']
  #allocation2 [shape = 'f32[2,8,8]{2,1,0:T(8,128)}', space=vmem, size = 0x2000, scoped, tag = 'scratch operand']
  #allocation3 [shape = 'f32[2,8,8]{2,1,0:T(8,128)}', space=vmem, size = 0x2000, scoped, tag = 'scratch operand']
  #allocation4 [shape = 'f32[8,32]{1,0:T(8,128)}', space=vmem, size = 0x1000, scoped, tag = 'scratch operand']
  %s0 = inlined_call_operand.vmem [shape: f32[2,8,32], index: 0, kind: input, shape index: {}]
  %s1 = inlined_call_operand.vmem [shape: f32[2,32,8], index: 1, kind: input, shape index: {}]
  %s2 = inlined_call_operand.vmem [shape: f32[2,1,8], index: 2, kind: input, shape index: {}]
  %s3 = inlined_call_operand.vmem [shape: f32[2,32,8], index: 3, kind: input, shape index: {}]
  %s4 = inlined_call_operand.vmem [shape: f32[2,1,8], index: 4, kind: input, shape index: {}]
  %s5 = inlined_call_operand.vmem [shape: f32[2,32,8], index: 5, kind: input, shape index: {}]
  %s6 = inlined_call_operand.vmem [shape: f32[2,1,8], index: 6, kind: input, shape index: {}]
  %s7 = inlined_call_operand.vmem [shape: f32[2,8,32], index: 7, kind: input, shape index: {}]
  %s8 = inlined_call_operand.vmem [shape: f32[1,32], index: 8, kind: input, shape index: {}]
  %s9 = inlined_call_operand.vmem [shape: f32[1,32], index: 9, kind: input, shape index: {}]
  %s10 = inlined_call_operand.vmem [shape: f32[1,32], index: 10, kind: input, shape index: {}]
  %s11 = inlined_call_operand.vmem [shape: f32[32,64], index: 11, kind: input, shape index: {}]
  %s12 = inlined_call_operand.vmem [shape: f32[1,64], index: 12, kind: input, shape index: {}]
  %s13 = inlined_call_operand.vmem [shape: f32[64,32], index: 13, kind: input, shape index: {}]
  %s14 = inlined_call_operand.vmem [shape: f32[1,32], index: 14, kind: input, shape index: {}]
  %s15 = inlined_call_operand.vmem [shape: f32[1,32], index: 15, kind: input, shape index: {}]
  %s16 = inlined_call_operand.vmem [shape: f32[1,32], index: 16, kind: input, shape index: {}]
  %s17 = inlined_call_operand.hbm [shape: f32[2,8,32], index: 17, kind: output, shape index: {0}]
  %s18 = inlined_call_operand.hbm [shape: f32[2,2,8,8], index: 18, kind: output, shape index: {1}]
  %19 = xla_tuple %s17, %s18
  %s20 = sld [smem:[#allocation0]]
  $region127: #{tpu_custom_call.1} parent=0
    _
  %s22 = ssub.s32 1, %s20
  %s23 = scalar_select 0, %s22, %s20
  $region1: #{tpu_custom_call.1} parent=0
    #allocation5 [shape = 'u8[8192]{0}', space=vmem, size = 0x2000, scoped, tag = 'output window, operand 0']
    #allocation6 [shape = 's32[2]{0}', space=sflag, size = 0x8, scoped, tag = 'scoped memory for tpu_custom_call.1']
    #allocation7 [shape = 'u8[16384]{0}', space=vmem, size = 0x4000, scoped, tag = 'output window, operand 1']
    #allocation8 [shape = 's32[2]{0}', space=sflag, size = 0x8, scoped, tag = 'scoped memory for tpu_custom_call.1']
    %24 = vsyncpa [#allocation6], 0
    %s25 = scalar_lea.sflag [#allocation6], 1
    %26 = vsyncpa %s25, 0
    %27 = vsyncpa [#allocation8], 0
    %s28 = scalar_lea.sflag [#allocation8], 1
    %29 = vsyncpa %s28, 0
    loop: start=0, step=1, limit=4
    $region2: #{tpu_custom_call.1} parent=1 // loop_pre_header
      _
    $region3: #{tpu_custom_call.1} parent=1 // loop_header
      %s31 = sphi 0, %s35
      %p32 = scmp.ge.s32.totalorder %s31, 4
      %s38 = sphi 0, %s50
      %s39 = sphi 0, %s46
      %s40 = sphi 0, %s38
      %s41 = sphi 0, %s39
      %s42 = sphi 0, %s40
      %s43 = sphi 0, %s41
      %s53 = sphi 0, %s55
      %s56 = sphi 0, %s53
      %s57 = sphi 0, %s56
      %s73 = sphi 0, %s57
      %s77 = sphi 0, %s77
      %s79 = sphi 0, %s77
      %s80 = sphi 0, %s79
      %s94 = sphi 0, %s80
      %s98 = sphi 0, %s98
      %s100 = sphi 0, %s98
      %s101 = sphi 0, %s100
      %s115 = sphi 0, %s101
      %s119 = sphi 0, %s119
      %s121 = sphi 0, %s119
      %s122 = sphi 0, %s121
      %s136 = sphi 0, %s122
      %s140 = sphi 0, %s140
      %s142 = sphi 0, %s140
      %s143 = sphi 0, %s142
      %s157 = sphi 0, %s143
      %s161 = sphi 0, %s161
      %s163 = sphi 0, %s161
      %s164 = sphi 0, %s163
      %s178 = sphi 0, %s164
      %s182 = sphi 0, %s182
      %s184 = sphi 0, %s182
      %s185 = sphi 0, %s184
      %s199 = sphi 0, %s185
      %s203 = sphi 0, %s203
      %s205 = sphi 0, %s203
      %s206 = sphi 0, %s205
      %s220 = sphi 0, %s206
      %s224 = sphi 0, %s224
      %s226 = sphi 0, %s224
      %s227 = sphi 0, %s226
      %s241 = sphi 0, %s227
      %s245 = sphi 0, %s245
      %s247 = sphi 0, %s245
      %s248 = sphi 0, %s247
      %s262 = sphi 0, %s248
      %s266 = sphi 0, %s266
      %s268 = sphi 0, %s266
      %s269 = sphi 0, %s268
      %s283 = sphi 0, %s269
      %s287 = sphi 0, %s287
      %s289 = sphi 0, %s287
      %s290 = sphi 0, %s289
      %s304 = sphi 0, %s290
      %s308 = sphi 0, %s308
      %s310 = sphi 0, %s308
      %s311 = sphi 0, %s310
      %s325 = sphi 0, %s311
      %s329 = sphi 0, %s329
      %s331 = sphi 0, %s329
      %s332 = sphi 0, %s331
      %s346 = sphi 0, %s332
      %s350 = sphi 0, %s350
      %s352 = sphi 0, %s350
      %s353 = sphi 0, %s352
      %s367 = sphi 0, %s353
      %s371 = sphi 0, %s371
      %s373 = sphi 0, %s371
      %s374 = sphi 0, %s373
      %s388 = sphi 0, %s374
      %s392 = sphi 0, %s392
      %s394 = sphi 0, %s392
      %s395 = sphi 0, %s394
      %s409 = sphi 0, %s395
      %s417 = sphi 0, %s419
      %s420 = sphi 0, %s417
      %s421 = sphi 0, %s420
      %s437 = sphi 0, %s421
      %s445 = sphi 0, %s447
      %s448 = sphi 0, %s445
      %s449 = sphi 0, %s448
      %s465 = sphi 0, %s449
    $region4: #{tpu_custom_call.1} parent=1 // loop_header_branch
      %34 = sbr.rel (%p32) target = $region8
    $region5: #{tpu_custom_call.1} parent=1 // loop_body
      %s36 = ssub.s32 %s31, 1
      %s37 = ssub.s32 %s31, 2
      %s44 = sadd.s32 1, %s39
      %p45 = scmp.ge.s32.totalorder %s44, 1
      %s46 = scalar_select %p45, 0, %s44
      %s47 = sadd.s32 1, %s38
      %s48 = scalar_select %p45, %s47, %s38
      %p49 = scmp.ge.s32.totalorder %s48, 2
      %s50 = scalar_select %p49, 0, %s48
      %s51 = ssub.s32 %s38, %s50
      %p52 = scmp.eq.s32.totalorder %s51, 0
      %s54 = sadd.s32 %s53, 1
      %s55 = scalar_select %p52, %s53, %s54
      %p58 = pneg %p52
      %p59 = scmp.eq.s32.totalorder %s31, 1
      %p60 = por %p58, %p59
      %p61 = scmp.ne.s32.totalorder %s53, %s56
      %p62 = scmp.eq.s32.totalorder %s31, 0
      %p63 = por %p61, %p62
      %p64 = scmp.ne.s32.totalorder %s53, %s56
      %p65 = scmp.eq.s32.totalorder %s36, 1
      %p66 = por %p64, %p65
      %p67 = scmp.ne.s32.totalorder %s56, %s57
      %p68 = scmp.eq.s32.totalorder %s36, 0
      %p69 = por %p67, %p68
      %p70 = scmp.ne.s32.totalorder %s56, %s57
      %p71 = scmp.eq.s32.totalorder %s37, 1
      %p72 = por %p70, %p71
      %p74 = scmp.ne.s32.totalorder %s57, %s73
      %p75 = scmp.eq.s32.totalorder %s37, 0
      %p76 = por %p74, %p75
      %s78 = sadd.s32 %s77, 1
      %p81 = scmp.eq.s32.totalorder %s31, 1
      %p82 = scmp.ne.s32.totalorder %s77, %s79
      %p83 = scmp.eq.s32.totalorder %s31, 0
      %p84 = por %p82, %p83
      %p85 = scmp.ne.s32.totalorder %s77, %s79
      %p86 = scmp.eq.s32.totalorder %s36, 1
      %p87 = por %p85, %p86
      %p88 = scmp.ne.s32.totalorder %s79, %s80
      %p89 = scmp.eq.s32.totalorder %s36, 0
      %p90 = por %p88, %p89
      %p91 = scmp.ne.s32.totalorder %s79, %s80
      %p92 = scmp.eq.s32.totalorder %s37, 1
      %p93 = por %p91, %p92
      %p95 = scmp.ne.s32.totalorder %s80, %s94
      %p96 = scmp.eq.s32.totalorder %s37, 0
      %p97 = por %p95, %p96
      %s99 = sadd.s32 %s98, 1
      %p102 = scmp.eq.s32.totalorder %s31, 1
      %p103 = scmp.ne.s32.totalorder %s98, %s100
      %p104 = scmp.eq.s32.totalorder %s31, 0
      %p105 = por %p103, %p104
      %p106 = scmp.ne.s32.totalorder %s98, %s100
      %p107 = scmp.eq.s32.totalorder %s36, 1
      %p108 = por %p106, %p107
      %p109 = scmp.ne.s32.totalorder %s100, %s101
      %p110 = scmp.eq.s32.totalorder %s36, 0
      %p111 = por %p109, %p110
      %p112 = scmp.ne.s32.totalorder %s100, %s101
      %p113 = scmp.eq.s32.totalorder %s37, 1
      %p114 = por %p112, %p113
      %p116 = scmp.ne.s32.totalorder %s101, %s115
      %p117 = scmp.eq.s32.totalorder %s37, 0
      %p118 = por %p116, %p117
      %s120 = sadd.s32 %s119, 1
      %p123 = scmp.eq.s32.totalorder %s31, 1
      %p124 = scmp.ne.s32.totalorder %s119, %s121
      %p125 = scmp.eq.s32.totalorder %s31, 0
      %p126 = por %p124, %p125
      %p127 = scmp.ne.s32.totalorder %s119, %s121
      %p128 = scmp.eq.s32.totalorder %s36, 1
      %p129 = por %p127, %p128
      %p130 = scmp.ne.s32.totalorder %s121, %s122
      %p131 = scmp.eq.s32.totalorder %s36, 0
      %p132 = por %p130, %p131
      %p133 = scmp.ne.s32.totalorder %s121, %s122
      %p134 = scmp.eq.s32.totalorder %s37, 1
      %p135 = por %p133, %p134
      %p137 = scmp.ne.s32.totalorder %s122, %s136
      %p138 = scmp.eq.s32.totalorder %s37, 0
      %p139 = por %p137, %p138
      %s141 = sadd.s32 %s140, 1
      %p144 = scmp.eq.s32.totalorder %s31, 1
      %p145 = scmp.ne.s32.totalorder %s140, %s142
      %p146 = scmp.eq.s32.totalorder %s31, 0
      %p147 = por %p145, %p146
      %p148 = scmp.ne.s32.totalorder %s140, %s142
      %p149 = scmp.eq.s32.totalorder %s36, 1
      %p150 = por %p148, %p149
      %p151 = scmp.ne.s32.totalorder %s142, %s143
      %p152 = scmp.eq.s32.totalorder %s36, 0
      %p153 = por %p151, %p152
      %p154 = scmp.ne.s32.totalorder %s142, %s143
      %p155 = scmp.eq.s32.totalorder %s37, 1
      %p156 = por %p154, %p155
      %p158 = scmp.ne.s32.totalorder %s143, %s157
      %p159 = scmp.eq.s32.totalorder %s37, 0
      %p160 = por %p158, %p159
      %s162 = sadd.s32 %s161, 1
      %p165 = scmp.eq.s32.totalorder %s31, 1
      %p166 = scmp.ne.s32.totalorder %s161, %s163
      %p167 = scmp.eq.s32.totalorder %s31, 0
      %p168 = por %p166, %p167
      %p169 = scmp.ne.s32.totalorder %s161, %s163
      %p170 = scmp.eq.s32.totalorder %s36, 1
      %p171 = por %p169, %p170
      %p172 = scmp.ne.s32.totalorder %s163, %s164
      %p173 = scmp.eq.s32.totalorder %s36, 0
      %p174 = por %p172, %p173
      %p175 = scmp.ne.s32.totalorder %s163, %s164
      %p176 = scmp.eq.s32.totalorder %s37, 1
      %p177 = por %p175, %p176
      %p179 = scmp.ne.s32.totalorder %s164, %s178
      %p180 = scmp.eq.s32.totalorder %s37, 0
      %p181 = por %p179, %p180
      %s183 = sadd.s32 %s182, 1
      %p186 = scmp.eq.s32.totalorder %s31, 1
      %p187 = scmp.ne.s32.totalorder %s182, %s184
      %p188 = scmp.eq.s32.totalorder %s31, 0
      %p189 = por %p187, %p188
      %p190 = scmp.ne.s32.totalorder %s182, %s184
      %p191 = scmp.eq.s32.totalorder %s36, 1
      %p192 = por %p190, %p191
      %p193 = scmp.ne.s32.totalorder %s184, %s185
      %p194 = scmp.eq.s32.totalorder %s36, 0
      %p195 = por %p193, %p194
      %p196 = scmp.ne.s32.totalorder %s184, %s185
      %p197 = scmp.eq.s32.totalorder %s37, 1
      %p198 = por %p196, %p197
      %p200 = scmp.ne.s32.totalorder %s185, %s199
      %p201 = scmp.eq.s32.totalorder %s37, 0
      %p202 = por %p200, %p201
      %s204 = sadd.s32 %s203, 1
      %p207 = scmp.eq.s32.totalorder %s31, 1
      %p208 = scmp.ne.s32.totalorder %s203, %s205
      %p209 = scmp.eq.s32.totalorder %s31, 0
      %p210 = por %p208, %p209
      %p211 = scmp.ne.s32.totalorder %s203, %s205
      %p212 = scmp.eq.s32.totalorder %s36, 1
      %p213 = por %p211, %p212
      %p214 = scmp.ne.s32.totalorder %s205, %s206
      %p215 = scmp.eq.s32.totalorder %s36, 0
      %p216 = por %p214, %p215
      %p217 = scmp.ne.s32.totalorder %s205, %s206
      %p218 = scmp.eq.s32.totalorder %s37, 1
      %p219 = por %p217, %p218
      %p221 = scmp.ne.s32.totalorder %s206, %s220
      %p222 = scmp.eq.s32.totalorder %s37, 0
      %p223 = por %p221, %p222
      %s225 = sadd.s32 %s224, 1
      %p228 = scmp.eq.s32.totalorder %s31, 1
      %p229 = scmp.ne.s32.totalorder %s224, %s226
      %p230 = scmp.eq.s32.totalorder %s31, 0
      %p231 = por %p229, %p230
      %p232 = scmp.ne.s32.totalorder %s224, %s226
      %p233 = scmp.eq.s32.totalorder %s36, 1
      %p234 = por %p232, %p233
      %p235 = scmp.ne.s32.totalorder %s226, %s227
      %p236 = scmp.eq.s32.totalorder %s36, 0
      %p237 = por %p235, %p236
      %p238 = scmp.ne.s32.totalorder %s226, %s227
      %p239 = scmp.eq.s32.totalorder %s37, 1
      %p240 = por %p238, %p239
      %p242 = scmp.ne.s32.totalorder %s227, %s241
      %p243 = scmp.eq.s32.totalorder %s37, 0
      %p244 = por %p242, %p243
      %s246 = sadd.s32 %s245, 1
      %p249 = scmp.eq.s32.totalorder %s31, 1
      %p250 = scmp.ne.s32.totalorder %s245, %s247
      %p251 = scmp.eq.s32.totalorder %s31, 0
      %p252 = por %p250, %p251
      %p253 = scmp.ne.s32.totalorder %s245, %s247
      %p254 = scmp.eq.s32.totalorder %s36, 1
      %p255 = por %p253, %p254
      %p256 = scmp.ne.s32.totalorder %s247, %s248
      %p257 = scmp.eq.s32.totalorder %s36, 0
      %p258 = por %p256, %p257
      %p259 = scmp.ne.s32.totalorder %s247, %s248
      %p260 = scmp.eq.s32.totalorder %s37, 1
      %p261 = por %p259, %p260
      %p263 = scmp.ne.s32.totalorder %s248, %s262
      %p264 = scmp.eq.s32.totalorder %s37, 0
      %p265 = por %p263, %p264
      %s267 = sadd.s32 %s266, 1
      %p270 = scmp.eq.s32.totalorder %s31, 1
      %p271 = scmp.ne.s32.totalorder %s266, %s268
      %p272 = scmp.eq.s32.totalorder %s31, 0
      %p273 = por %p271, %p272
      %p274 = scmp.ne.s32.totalorder %s266, %s268
      %p275 = scmp.eq.s32.totalorder %s36, 1
      %p276 = por %p274, %p275
      %p277 = scmp.ne.s32.totalorder %s268, %s269
      %p278 = scmp.eq.s32.totalorder %s36, 0
      %p279 = por %p277, %p278
      %p280 = scmp.ne.s32.totalorder %s268, %s269
      %p281 = scmp.eq.s32.totalorder %s37, 1
      %p282 = por %p280, %p281
      %p284 = scmp.ne.s32.totalorder %s269, %s283
      %p285 = scmp.eq.s32.totalorder %s37, 0
      %p286 = por %p284, %p285
      %s288 = sadd.s32 %s287, 1
      %p291 = scmp.eq.s32.totalorder %s31, 1
      %p292 = scmp.ne.s32.totalorder %s287, %s289
      %p293 = scmp.eq.s32.totalorder %s31, 0
      %p294 = por %p292, %p293
      %p295 = scmp.ne.s32.totalorder %s287, %s289
      %p296 = scmp.eq.s32.totalorder %s36, 1
      %p297 = por %p295, %p296
      %p298 = scmp.ne.s32.totalorder %s289, %s290
      %p299 = scmp.eq.s32.totalorder %s36, 0
      %p300 = por %p298, %p299
      %p301 = scmp.ne.s32.totalorder %s289, %s290
      %p302 = scmp.eq.s32.totalorder %s37, 1
      %p303 = por %p301, %p302
      %p305 = scmp.ne.s32.totalorder %s290, %s304
      %p306 = scmp.eq.s32.totalorder %s37, 0
      %p307 = por %p305, %p306
      %s309 = sadd.s32 %s308, 1
      %p312 = scmp.eq.s32.totalorder %s31, 1
      %p313 = scmp.ne.s32.totalorder %s308, %s310
      %p314 = scmp.eq.s32.totalorder %s31, 0
      %p315 = por %p313, %p314
      %p316 = scmp.ne.s32.totalorder %s308, %s310
      %p317 = scmp.eq.s32.totalorder %s36, 1
      %p318 = por %p316, %p317
      %p319 = scmp.ne.s32.totalorder %s310, %s311
      %p320 = scmp.eq.s32.totalorder %s36, 0
      %p321 = por %p319, %p320
      %p322 = scmp.ne.s32.totalorder %s310, %s311
      %p323 = scmp.eq.s32.totalorder %s37, 1
      %p324 = por %p322, %p323
      %p326 = scmp.ne.s32.totalorder %s311, %s325
      %p327 = scmp.eq.s32.totalorder %s37, 0
      %p328 = por %p326, %p327
      %s330 = sadd.s32 %s329, 1
      %p333 = scmp.eq.s32.totalorder %s31, 1
      %p334 = scmp.ne.s32.totalorder %s329, %s331
      %p335 = scmp.eq.s32.totalorder %s31, 0
      %p336 = por %p334, %p335
      %p337 = scmp.ne.s32.totalorder %s329, %s331
      %p338 = scmp.eq.s32.totalorder %s36, 1
      %p339 = por %p337, %p338
      %p340 = scmp.ne.s32.totalorder %s331, %s332
      %p341 = scmp.eq.s32.totalorder %s36, 0
      %p342 = por %p340, %p341
      %p343 = scmp.ne.s32.totalorder %s331, %s332
      %p344 = scmp.eq.s32.totalorder %s37, 1
      %p345 = por %p343, %p344
      %p347 = scmp.ne.s32.totalorder %s332, %s346
      %p348 = scmp.eq.s32.totalorder %s37, 0
      %p349 = por %p347, %p348
      %s351 = sadd.s32 %s350, 1
      %p354 = scmp.eq.s32.totalorder %s31, 1
      %p355 = scmp.ne.s32.totalorder %s350, %s352
      %p356 = scmp.eq.s32.totalorder %s31, 0
      %p357 = por %p355, %p356
      %p358 = scmp.ne.s32.totalorder %s350, %s352
      %p359 = scmp.eq.s32.totalorder %s36, 1
      %p360 = por %p358, %p359
      %p361 = scmp.ne.s32.totalorder %s352, %s353
      %p362 = scmp.eq.s32.totalorder %s36, 0
      %p363 = por %p361, %p362
      %p364 = scmp.ne.s32.totalorder %s352, %s353
      %p365 = scmp.eq.s32.totalorder %s37, 1
      %p366 = por %p364, %p365
      %p368 = scmp.ne.s32.totalorder %s353, %s367
      %p369 = scmp.eq.s32.totalorder %s37, 0
      %p370 = por %p368, %p369
      %s372 = sadd.s32 %s371, 1
      %p375 = scmp.eq.s32.totalorder %s31, 1
      %p376 = scmp.ne.s32.totalorder %s371, %s373
      %p377 = scmp.eq.s32.totalorder %s31, 0
      %p378 = por %p376, %p377
      %p379 = scmp.ne.s32.totalorder %s371, %s373
      %p380 = scmp.eq.s32.totalorder %s36, 1
      %p381 = por %p379, %p380
      %p382 = scmp.ne.s32.totalorder %s373, %s374
      %p383 = scmp.eq.s32.totalorder %s36, 0
      %p384 = por %p382, %p383
      %p385 = scmp.ne.s32.totalorder %s373, %s374
      %p386 = scmp.eq.s32.totalorder %s37, 1
      %p387 = por %p385, %p386
      %p389 = scmp.ne.s32.totalorder %s374, %s388
      %p390 = scmp.eq.s32.totalorder %s37, 0
      %p391 = por %p389, %p390
      %s393 = sadd.s32 %s392, 1
      %p396 = scmp.eq.s32.totalorder %s31, 1
      %p397 = scmp.ne.s32.totalorder %s392, %s394
      %p398 = scmp.eq.s32.totalorder %s31, 0
      %p399 = por %p397, %p398
      %p400 = scmp.ne.s32.totalorder %s392, %s394
      %p401 = scmp.eq.s32.totalorder %s36, 1
      %p402 = por %p400, %p401
      %p403 = scmp.ne.s32.totalorder %s394, %s395
      %p404 = scmp.eq.s32.totalorder %s36, 0
      %p405 = por %p403, %p404
      %p406 = scmp.ne.s32.totalorder %s394, %s395
      %p407 = scmp.eq.s32.totalorder %s37, 1
      %p408 = por %p406, %p407
      %p410 = scmp.ne.s32.totalorder %s395, %s409
      %p411 = scmp.eq.s32.totalorder %s37, 0
      %p412 = por %p410, %p411
      %s413 = ssub.s32 %s38, %s50
      %s414 = ssub.s32 %s39, %s46
      %s415 = sor.u32 %s413, %s414
      %p416 = scmp.eq.s32.totalorder %s415, 0
      %s418 = sadd.s32 %s417, 1
      %s419 = scalar_select %p416, %s417, %s418
      %p422 = pneg %p416
      %p423 = scmp.eq.s32.totalorder %s31, 1
      %p424 = por %p422, %p423
      %p425 = scmp.ne.s32.totalorder %s417, %s420
      %p426 = scmp.eq.s32.totalorder %s31, 0
      %p427 = por %p425, %p426
      %p428 = scmp.ne.s32.totalorder %s417, %s420
      %p429 = scmp.eq.s32.totalorder %s36, 1
      %p430 = por %p428, %p429
      %p431 = scmp.ne.s32.totalorder %s420, %s421
      %p432 = scmp.eq.s32.totalorder %s36, 0
      %p433 = por %p431, %p432
      %p434 = scmp.ne.s32.totalorder %s420, %s421
      %p435 = scmp.eq.s32.totalorder %s37, 1
      %p436 = por %p434, %p435
      %p438 = scmp.ne.s32.totalorder %s421, %s437
      %p439 = scmp.eq.s32.totalorder %s37, 0
      %p440 = por %p438, %p439
      %s441 = ssub.s32 %s38, %s50
      %s442 = ssub.s32 %s39, %s46
      %s443 = sor.u32 %s441, %s442
      %p444 = scmp.eq.s32.totalorder %s443, 0
      %s446 = sadd.s32 %s445, 1
      %s447 = scalar_select %p444, %s445, %s446
      %p450 = pneg %p444
      %p451 = scmp.eq.s32.totalorder %s31, 1
      %p452 = por %p450, %p451
      %p453 = scmp.ne.s32.totalorder %s445, %s448
      %p454 = scmp.eq.s32.totalorder %s31, 0
      %p455 = por %p453, %p454
      %p456 = scmp.ne.s32.totalorder %s445, %s448
      %p457 = scmp.eq.s32.totalorder %s36, 1
      %p458 = por %p456, %p457
      %p459 = scmp.ne.s32.totalorder %s448, %s449
      %p460 = scmp.eq.s32.totalorder %s36, 0
      %p461 = por %p459, %p460
      %p462 = scmp.ne.s32.totalorder %s448, %s449
      %p463 = scmp.eq.s32.totalorder %s37, 1
      %p464 = por %p462, %p463
      %p466 = scmp.ne.s32.totalorder %s449, %s465
      %p467 = scmp.eq.s32.totalorder %s37, 0
      %p468 = por %p466, %p467
      %p469 = scmp.le.s32.totalorder 1, %s31
      %p470 = scmp.lt.s32.totalorder %s31, 3
      %p471 = pnand %p469, %p470
      %p472 = pneg %p471
      // Predicated region
      $region9: #{tpu_custom_call.1} parent=5 // pred_check
        _
      $region10: #{tpu_custom_call.1} parent=5 // pred_check_branch
        %474 = sbr.rel (%p471) target = $region12
      $region11: #{tpu_custom_call.1} parent=5 // pred_region
        %s475 = ssub.s32 %s31, 1
        // Predicated region
        $region13: #{tpu_custom_call.1} parent=11 // pred_check
          %p476 = pneg %p90
        $region14: #{tpu_custom_call.1} parent=11 // pred_check_branch
          %478 = sbr.rel (%p476) target = $region16
        $region15: #{tpu_custom_call.1} parent=11 // pred_region
          _
        $region16: #{tpu_custom_call.1} parent=11 // pred_fallthru
          _
        // Predicated region
        $region17: #{tpu_custom_call.1} parent=11 // pred_check
          %p479 = pneg %p111
        $region18: #{tpu_custom_call.1} parent=11 // pred_check_branch
          %481 = sbr.rel (%p479) target = $region20
        $region19: #{tpu_custom_call.1} parent=11 // pred_region
          _
        $region20: #{tpu_custom_call.1} parent=11 // pred_fallthru
          _
        // Predicated region
        $region21: #{tpu_custom_call.1} parent=11 // pred_check
          %p482 = pneg %p132
        $region22: #{tpu_custom_call.1} parent=11 // pred_check_branch
          %484 = sbr.rel (%p482) target = $region24
        $region23: #{tpu_custom_call.1} parent=11 // pred_region
          _
        $region24: #{tpu_custom_call.1} parent=11 // pred_fallthru
          _
        // Predicated region
        $region25: #{tpu_custom_call.1} parent=11 // pred_check
          %p485 = pneg %p153
        $region26: #{tpu_custom_call.1} parent=11 // pred_check_branch
          %487 = sbr.rel (%p485) target = $region28
        $region27: #{tpu_custom_call.1} parent=11 // pred_region
          _
        $region28: #{tpu_custom_call.1} parent=11 // pred_fallthru
          _
        // Predicated region
        $region29: #{tpu_custom_call.1} parent=11 // pred_check
          %p488 = pneg %p174
        $region30: #{tpu_custom_call.1} parent=11 // pred_check_branch
          %490 = sbr.rel (%p488) target = $region32
        $region31: #{tpu_custom_call.1} parent=11 // pred_region
          _
        $region32: #{tpu_custom_call.1} parent=11 // pred_fallthru
          _
        // Predicated region
        $region33: #{tpu_custom_call.1} parent=11 // pred_check
          %p491 = pneg %p195
        $region34: #{tpu_custom_call.1} parent=11 // pred_check_branch
          %493 = sbr.rel (%p491) target = $region36
        $region35: #{tpu_custom_call.1} parent=11 // pred_region
          _
        $region36: #{tpu_custom_call.1} parent=11 // pred_fallthru
          _
        // Predicated region
        $region37: #{tpu_custom_call.1} parent=11 // pred_check
          %p494 = pneg %p216
        $region38: #{tpu_custom_call.1} parent=11 // pred_check_branch
          %496 = sbr.rel (%p494) target = $region40
        $region39: #{tpu_custom_call.1} parent=11 // pred_region
          _
        $region40: #{tpu_custom_call.1} parent=11 // pred_fallthru
          _
        // Predicated region
        $region41: #{tpu_custom_call.1} parent=11 // pred_check
          %p497 = pneg %p237
        $region42: #{tpu_custom_call.1} parent=11 // pred_check_branch
          %499 = sbr.rel (%p497) target = $region44
        $region43: #{tpu_custom_call.1} parent=11 // pred_region
          _
        $region44: #{tpu_custom_call.1} parent=11 // pred_fallthru
          _
        // Predicated region
        $region45: #{tpu_custom_call.1} parent=11 // pred_check
          %p500 = pneg %p258
        $region46: #{tpu_custom_call.1} parent=11 // pred_check_branch
          %502 = sbr.rel (%p500) target = $region48
        $region47: #{tpu_custom_call.1} parent=11 // pred_region
          _
        $region48: #{tpu_custom_call.1} parent=11 // pred_fallthru
          _
        // Predicated region
        $region49: #{tpu_custom_call.1} parent=11 // pred_check
          %p503 = pneg %p279
        $region50: #{tpu_custom_call.1} parent=11 // pred_check_branch
          %505 = sbr.rel (%p503) target = $region52
        $region51: #{tpu_custom_call.1} parent=11 // pred_region
          _
        $region52: #{tpu_custom_call.1} parent=11 // pred_fallthru
          _
        // Predicated region
        $region53: #{tpu_custom_call.1} parent=11 // pred_check
          %p506 = pneg %p300
        $region54: #{tpu_custom_call.1} parent=11 // pred_check_branch
          %508 = sbr.rel (%p506) target = $region56
        $region55: #{tpu_custom_call.1} parent=11 // pred_region
          _
        $region56: #{tpu_custom_call.1} parent=11 // pred_fallthru
          _
        // Predicated region
        $region57: #{tpu_custom_call.1} parent=11 // pred_check
          %p509 = pneg %p321
        $region58: #{tpu_custom_call.1} parent=11 // pred_check_branch
          %511 = sbr.rel (%p509) target = $region60
        $region59: #{tpu_custom_call.1} parent=11 // pred_region
          _
        $region60: #{tpu_custom_call.1} parent=11 // pred_fallthru
          _
        // Predicated region
        $region61: #{tpu_custom_call.1} parent=11 // pred_check
          %p512 = pneg %p342
        $region62: #{tpu_custom_call.1} parent=11 // pred_check_branch
          %514 = sbr.rel (%p512) target = $region64
        $region63: #{tpu_custom_call.1} parent=11 // pred_region
          _
        $region64: #{tpu_custom_call.1} parent=11 // pred_fallthru
          _
        // Predicated region
        $region65: #{tpu_custom_call.1} parent=11 // pred_check
          %p515 = pneg %p363
        $region66: #{tpu_custom_call.1} parent=11 // pred_check_branch
          %517 = sbr.rel (%p515) target = $region68
        $region67: #{tpu_custom_call.1} parent=11 // pred_region
          _
        $region68: #{tpu_custom_call.1} parent=11 // pred_fallthru
          _
        // Predicated region
        $region69: #{tpu_custom_call.1} parent=11 // pred_check
          %p518 = pneg %p384
        $region70: #{tpu_custom_call.1} parent=11 // pred_check_branch
          %520 = sbr.rel (%p518) target = $region72
        $region71: #{tpu_custom_call.1} parent=11 // pred_region
          _
        $region72: #{tpu_custom_call.1} parent=11 // pred_fallthru
          _
        // Predicated region
        $region73: #{tpu_custom_call.1} parent=11 // pred_check
          %p521 = pneg %p405
        $region74: #{tpu_custom_call.1} parent=11 // pred_check_branch
          %523 = sbr.rel (%p521) target = $region76
        $region75: #{tpu_custom_call.1} parent=11 // pred_region
          _
        $region76: #{tpu_custom_call.1} parent=11 // pred_fallthru
          _
      $region12: #{tpu_custom_call.1} parent=5 // pred_fallthru
        _
      %p524 = scmp.lt.s32.totalorder %s31, 2
      // Predicated region
      $region77: #{tpu_custom_call.1} parent=5 // pred_check
        %p525 = pneg %p524
      $region78: #{tpu_custom_call.1} parent=5 // pred_check_branch
        %527 = sbr.rel (%p525) target = $region80
      $region79: #{tpu_custom_call.1} parent=5 // pred_region
        // Predicated region
        $region81: #{tpu_custom_call.1} parent=79 // pred_check
          %p528 = pneg %p63
        $region82: #{tpu_custom_call.1} parent=79 // pred_check_branch
          %530 = sbr.rel (%p528) target = $region84
        $region83: #{tpu_custom_call.1} parent=79 // pred_region
          %p531 = scmp.lt.s32.totalorder %s38, 1
          %s532 = scalar_select %p531, %s38, 1
          %s533 = smul.addr %s532, 8
          %s534 = scalar_lea.vmem %s0, %s533
        $region84: #{tpu_custom_call.1} parent=79 // pred_fallthru
          _
      $region80: #{tpu_custom_call.1} parent=5 // pred_fallthru
        _
      %p535 = scmp.le.s32.totalorder 1, %s31
      %p536 = scmp.lt.s32.totalorder %s31, 3
      %p537 = pnand %p535, %p536
      %p538 = pneg %p537
      // Predicated region
      $region85: #{tpu_custom_call.1} parent=5 // pred_check
        _
      $region86: #{tpu_custom_call.1} parent=5 // pred_check_branch
        %540 = sbr.rel (%p537) target = $region88
      $region87: #{tpu_custom_call.1} parent=5 // pred_region
        %s541 = ssub.s32 %s31, 1
        %p542 = scmp.lt.s32.totalorder %s40, 1
        %s543 = scalar_select %p542, %s40, 1
        %s544 = smul.addr %s543, 8
        %s545 = scalar_lea.vmem %s0, %s544
        %p546 = pneg %p69
        %p547 = pneg %p66
        %p548 = pneg %p90
        %p549 = pneg %p87
        %p550 = pneg %p111
        %p551 = pneg %p108
        %p552 = pneg %p132
        %p553 = pneg %p129
        %p554 = pneg %p153
        %p555 = pneg %p150
        %p556 = pneg %p174
        %p557 = pneg %p171
        %p558 = pneg %p195
        %p559 = pneg %p192
        %p560 = pneg %p216
        %p561 = pneg %p213
        %p562 = pneg %p237
        %p563 = pneg %p234
        %p564 = pneg %p258
        %p565 = pneg %p255
        %p566 = pneg %p279
        %p567 = pneg %p276
        %p568 = pneg %p300
        %p569 = pneg %p297
        %p570 = pneg %p321
        %p571 = pneg %p318
        %p572 = pneg %p342
        %p573 = pneg %p339
        %p574 = pneg %p363
        %p575 = pneg %p360
        %p576 = pneg %p384
        %p577 = pneg %p381
        %p578 = pneg %p405
        %p579 = pneg %p402
        %p580 = pneg %p433
        %p581 = pneg %p430
        %s582 = sand.u32 %s420, 1
        %s583 = scalar_lea.sflag [#allocation6], %s582
        %s584 = sand.u32 %s420, 1
        %s585 = smul.addr %s584, 8
        %s586 = scalar_lea.vmem [#allocation5], %s585
        %p587 = pneg %p461
        %p588 = pneg %p458
        %s589 = sand.u32 %s448, 1
        %s590 = scalar_lea.sflag [#allocation8], %s589
        %s591 = sand.u32 %s448, 1
        %s592 = smul.addr %s591, 16
        %s593 = scalar_lea.vmem [#allocation7], %s592
        %p594 = scmp.lt.s32.totalorder %s40, 1
        %s595 = scalar_select %p594, %s40, 1
        %s596 = smul.addr %s595, 8
        %s597 = scalar_lea.vmem %s0, %s596
        %p598 = scmp.eq.s32.totalorder %s41, 0
        // Predicated region
        $region89: #{tpu_custom_call.1} parent=87 // pred_check
          %p599 = pneg %p598
        $region90: #{tpu_custom_call.1} parent=87 // pred_check_branch
          %601 = sbr.rel (%p599) target = $region92
        $region91: #{tpu_custom_call.1} parent=87 // pred_region
          %v602 = vld [vmem:[%s597] sm:$0xff]
          loop: start=0, step=1, limit=2
          $region93: #{tpu_custom_call.1} parent=91 // loop_pre_header
            _
          $region94: #{tpu_custom_call.1} parent=91 // loop_header
            %s604 = sphi 0, %s608
            %p605 = scmp.ge.s32.totalorder %s604, 2
          $region95: #{tpu_custom_call.1} parent=91 // loop_header_branch
            %607 = sbr.rel (%p605) target = $region99
          $region96: #{tpu_custom_call.1} parent=91 // loop_body
            %s609 = smul.u32 %s604, 32
            %s610 = scalar_lea.vmem %s3, %s609
            %v611 = vld [vmem:[%s610] sm:$0xff]
            %v612 = vld [vmem:[%s610 + $0x8] sm:$0xff]
            %v613 = vld [vmem:[%s610 + $0x10] sm:$0xff]
            %v614 = vld [vmem:[%s610 + $0x18] sm:$0xff]
            %s615 = scalar_lea.vmem %s4, %s604
            %v616 = vld [vmem:[%s615] sm:$0x1]
            %v618 = vperm.slane %v616, 0
            %vm620 = vcmask 261120
            %v622 = vsel %vm620, %v602, 0
            %624 = vmatpush.msra.mxu0 0.0
            %625 = vmatpush.msra.mxu0 0.0
            %626 = vmatpush.msra.mxu0 0.0
            %627 = vmatpush.msra.mxu0 0.0
            %628 = vmatpush.msra.mxu0 0.0
            %629 = vmatpush.msra.mxu0 0.0
            %630 = vmatpush.msra.mxu0 0.0
            %631 = vmatpush.msra.mxu0 0.0
            %632 = vmatpush.msra.mxu0 0.0
            %633 = vmatpush.msra.mxu0 0.0
            %634 = vmatpush.msra.mxu0 0.0
            %635 = vmatpush.msra.mxu0 0.0
            %636 = vmatpush.msra.mxu0 %v614
            %637 = vmatpush.msra.mxu0 %v613
            %638 = vmatpush.msra.mxu0 %v612
            %639 = vmatpush.msra.mxu0 %v611
            %640 = vmatmul.f32.gmra.mxu0 %v622
            %v641 = vpop.f32.mrf.mxu0
            %v642 = vadd.f32 %v618, %v641
            %643 = vdwg.mxu0
            %s644 = smul.u32 %s604, 8
            %s645 = scalar_lea.vmem [#allocation2], %s644
            %vm646 = vcmask 64512
            %647 = vst.msk [vmem:[%s645] sm:$0xff] %vm646, %v642
            %s648 = scalar_lea.vmem %s5, %s609
            %v649 = vld [vmem:[%s648] sm:$0xff]
            %v650 = vld [vmem:[%s648 + $0x8] sm:$0xff]
            %v651 = vld [vmem:[%s648 + $0x10] sm:$0xff]
            %v652 = vld [vmem:[%s648 + $0x18] sm:$0xff]
            %s653 = scalar_lea.vmem %s6, %s604
            %v654 = vld [vmem:[%s653] sm:$0x1]
            %v656 = vperm.slane %v654, 0
            %658 = vmatpush.msra.mxu0 0.0
            %659 = vmatpush.msra.mxu0 0.0
            %660 = vmatpush.msra.mxu0 0.0
            %661 = vmatpush.msra.mxu0 0.0
            %662 = vmatpush.msra.mxu0 0.0
            %663 = vmatpush.msra.mxu0 0.0
            %664 = vmatpush.msra.mxu0 0.0
            %665 = vmatpush.msra.mxu0 0.0
            %666 = vmatpush.msra.mxu0 0.0
            %667 = vmatpush.msra.mxu0 0.0
            %668 = vmatpush.msra.mxu0 0.0
            %669 = vmatpush.msra.mxu0 0.0
            %670 = vmatpush.msra.mxu0 %v652
            %671 = vmatpush.msra.mxu0 %v651
            %672 = vmatpush.msra.mxu0 %v650
            %673 = vmatpush.msra.mxu0 %v649
            %674 = vmatmul.f32.gmra.mxu0 %v622
            %v675 = vpop.f32.mrf.mxu0
            %v676 = vadd.f32 %v656, %v675
            %677 = vdwg.mxu0
            %s678 = scalar_lea.vmem [#allocation3], %s644
            %679 = vst.msk [vmem:[%s678] sm:$0xff] %vm646, %v676
          $region97: #{tpu_custom_call.1} parent=91 // loop_footer
            %s608 = sadd.s32 1, %s604
          $region98: #{tpu_custom_call.1} parent=91 // loop_footer_branch
            %603 = sbr.rel target = $region94
          $region99: #{tpu_custom_call.1} parent=91 // loop_exit
            _
        $region92: #{tpu_custom_call.1} parent=87 // pred_fallthru
          _
        %s680 = smul.u32 %s41, 8
        %s681 = scalar_lea.vmem %s597, %s680
        %v682 = vld [vmem:[%s681] sm:$0xff]
        %vm683 = vcmask 261120
        %684 = vst.msk [vmem:[#allocation4] sm:$0xff] %vm683, 0.0
        loop: start=0, step=1, limit=2
        $region100: #{tpu_custom_call.1} parent=87 // loop_pre_header
          _
        $region101: #{tpu_custom_call.1} parent=87 // loop_header
          %s686 = sphi 0, %s690
          %p687 = scmp.ge.s32.totalorder %s686, 2
        $region102: #{tpu_custom_call.1} parent=87 // loop_header_branch
          %689 = sbr.rel (%p687) target = $region106
        $region103: #{tpu_custom_call.1} parent=87 // loop_body
          %s691 = smul.u32 %s686, 32
          %s692 = scalar_lea.vmem %s1, %s691
          %v693 = vld [vmem:[%s692] sm:$0xff]
          %v694 = vld [vmem:[%s692 + $0x8] sm:$0xff]
          %v695 = vld [vmem:[%s692 + $0x10] sm:$0xff]
          %v696 = vld [vmem:[%s692 + $0x18] sm:$0xff]
          %s697 = scalar_lea.vmem %s2, %s686
          %v698 = vld [vmem:[%s697] sm:$0x1]
          %v700 = vperm.slane %v698, 0
          %v703 = vsel %vm683, %v682, 0
          %705 = vmatpush.msra.mxu0 0.0
          %706 = vmatpush.msra.mxu0 0.0
          %707 = vmatpush.msra.mxu0 0.0
          %708 = vmatpush.msra.mxu0 0.0
          %709 = vmatpush.msra.mxu0 0.0
          %710 = vmatpush.msra.mxu0 0.0
          %711 = vmatpush.msra.mxu0 0.0
          %712 = vmatpush.msra.mxu0 0.0
          %713 = vmatpush.msra.mxu0 0.0
          %714 = vmatpush.msra.mxu0 0.0
          %715 = vmatpush.msra.mxu0 0.0
          %716 = vmatpush.msra.mxu0 0.0
          %717 = vmatpush.msra.mxu0 %v696
          %718 = vmatpush.msra.mxu0 %v695
          %719 = vmatpush.msra.mxu0 %v694
          %720 = vmatpush.msra.mxu0 %v693
          %721 = vmatmul.f32.gmra.mxu0 %v703
          %v722 = vpop.f32.mrf.mxu0
          %v723 = vadd.f32 %v700, %v722
          %724 = vdwg.mxu0
          %s725 = smul.u32 %s686, 8
          %s726 = scalar_lea.vmem [#allocation2], %s725
          %v727 = vld [vmem:[%s726] sm:$0xff]
          %s728 = scalar_lea.vmem [#allocation3], %s725
          %v729 = vld [vmem:[%s728] sm:$0xff]
          %vm730 = vcmask 64512
          %v732 = vsel %vm730, %v723, 0
          %v735 = vsel %vm730, %v727, 0
          %737 = vmatpush.xpose.msra.mxu0 0.0
          %738 = vmatpush.xpose.msra.mxu0 0.0
          %739 = vmatpush.xpose.msra.mxu0 0.0
          %740 = vmatpush.xpose.msra.mxu0 0.0
          %741 = vmatpush.xpose.msra.mxu0 0.0
          %742 = vmatpush.xpose.msra.mxu0 0.0
          %743 = vmatpush.xpose.msra.mxu0 0.0
          %744 = vmatpush.xpose.msra.mxu0 0.0
          %745 = vmatpush.xpose.msra.mxu0 0.0
          %746 = vmatpush.xpose.msra.mxu0 0.0
          %747 = vmatpush.xpose.msra.mxu0 0.0
          %748 = vmatpush.xpose.msra.mxu0 0.0
          %749 = vmatpush.xpose.msra.mxu0 0.0
          %750 = vmatpush.xpose.msra.mxu0 0.0
          %751 = vmatpush.xpose.msra.mxu0 0.0
          %752 = vmatpush.xpose.msra.mxu0 %v735
          %753 = vmatmul.f32.gmra.mxu0 %v732
          %v754 = vpop.f32.mrf.mxu0
          %v755 = vadd.f32 0.0, %v754
          %756 = vdwg.mxu0
          %v757 = vsel %vm730, %v755, -inf
          %758 = vmax.xlane.f32.xlu0 %v757
          %v759 = vpop.xlane.xlu0 %758
          %v760 = vsub.f32 %v755, %v759
          %v761 = vmul.f32 %v760, 1.442695
          %v762 = vpow.pop %v761
          %v763 = vsel %vm730, %v762, 0.0
          %764 = vadd.xlane.f32.xlu0 %v763
          %v765 = vpop.xlane.xlu0 %764
          %v766 = vrcp.pop %v765
          %v767 = vmul.f32 %v765, %v766
          %v768 = vsub.f32 1.0, %v767
          %v769 = vmul.f32 %v766, %v768
          %v770 = vadd.f32 %v766, %v769
          %vm771 = vweird.f32 %v765
          %vm772 = vweird.f32 %v766
          %vm773 = vmor %vm771, %vm772
          %v774 = vsel %vm773, %v766, %v770
          %v775 = vand.u32 2147483647, %v765
          %vm776 = vcmp.eq.f32.partialorder %v775, 8.507059e+37
          %v777 = vand.u32 %v765, 2147483648
          %v778 = vor.u32 1.1754944e-38, %v777
          %v779 = vsel %vm776, %v778, %v774
          %v780 = vmul.f32 %v762, %v779
          %s781 = scalar_lea.vmem %s593, %s725 [#allocation7]
          %782 = vst.msk [vmem:[%s781] sm:$0xff] %vm730, %v780
          %v784 = vsel %vm730, %v780, 0
          %786 = vmatpush.msra.mxu0 0.0
          %787 = vmatpush.msra.mxu0 0.0
          %788 = vmatpush.msra.mxu0 0.0
          %789 = vmatpush.msra.mxu0 0.0
          %790 = vmatpush.msra.mxu0 0.0
          %791 = vmatpush.msra.mxu0 0.0
          %792 = vmatpush.msra.mxu0 0.0
          %793 = vmatpush.msra.mxu0 0.0
          %794 = vmatpush.msra.mxu0 0.0
          %795 = vmatpush.msra.mxu0 0.0
          %796 = vmatpush.msra.mxu0 0.0
          %797 = vmatpush.msra.mxu0 0.0
          %798 = vmatpush.msra.mxu0 0.0
          %799 = vmatpush.msra.mxu0 0.0
          %800 = vmatpush.msra.mxu0 0.0
          %801 = vmatpush.msra.mxu0 %v729
          %802 = vmatmul.f32.gmra.mxu0 %v784
          %v803 = vpop.f32.mrf.mxu0
          %v804 = vadd.f32 0.0, %v803
          %805 = vdwg.mxu0
          %v806 = vld [vmem:[#allocation4] sm:$0xff]
          %s807 = scalar_lea.vmem %s7, %s725
          %v808 = vld [vmem:[%s807] sm:$0xff]
          %v810 = vsel %vm730, %v804, 0
          %812 = vmatpush.msra.mxu0 0.0
          %813 = vmatpush.msra.mxu0 0.0
          %814 = vmatpush.msra.mxu0 0.0
          %815 = vmatpush.msra.mxu0 0.0
          %816 = vmatpush.msra.mxu0 0.0
          %817 = vmatpush.msra.mxu0 0.0
          %818 = vmatpush.msra.mxu0 0.0
          %819 = vmatpush.msra.mxu0 0.0
          %820 = vmatpush.msra.mxu0 0.0
          %821 = vmatpush.msra.mxu0 0.0
          %822 = vmatpush.msra.mxu0 0.0
          %823 = vmatpush.msra.mxu0 0.0
          %824 = vmatpush.msra.mxu0 0.0
          %825 = vmatpush.msra.mxu0 0.0
          %826 = vmatpush.msra.mxu0 0.0
          %827 = vmatpush.msra.mxu0 %v808
          %828 = vmatmul.f32.gmra.mxu0 %v810
          %v829 = vpop.f32.mrf.mxu0
          %v830 = vadd.f32 0.0, %v829
          %831 = vdwg.mxu0
          %v832 = vadd.f32 %v806, %v830
          %833 = vst.msk [vmem:[#allocation4] sm:$0xff] %vm683, %v832
        $region104: #{tpu_custom_call.1} parent=87 // loop_footer
          %s690 = sadd.s32 1, %s686
        $region105: #{tpu_custom_call.1} parent=87 // loop_footer_branch
          %685 = sbr.rel target = $region101
        $region106: #{tpu_custom_call.1} parent=87 // loop_exit
          _
        %v834 = vld [vmem:[#allocation4] sm:$0xff]
        %v835 = vld [vmem:[%s8] sm:$0x1]
        %v837 = vperm.slane %v835, 0
        %v839 = vadd.f32 %v834, %v837
        %v840 = vadd.f32 %v839, %v682
        %v841 = vsel %vm683, %v840, 0.0
        %842 = vadd.xlane.f32.xlu0 %v841
        %v843 = vpop.xlane.xlu0 %842
        %v844 = vmul.f32 %v843, 0.03125
        %v845 = vmul.f32 %v840, %v840
        %v846 = vsel %vm683, %v845, 0.0
        %847 = vadd.xlane.f32.xlu0 %v846
        %v848 = vpop.xlane.xlu0 %847
        %v849 = vmul.f32 %v848, 0.03125
        %v850 = vsub.f32 %v840, %v844
        %v851 = vmul.f32 %v844, %v844
        %v852 = vsub.f32 %v849, %v851
        %v853 = vadd.f32 %v852, 1e-06
        %v854 = vrsqrt.pop %v853
        %v855 = vmul.f32 %v854, %v853
        %v856 = vmul.f32 %v855, %v854
        %v857 = vmul.f32 0.5, %v856
        %v858 = vsub.f32 1.5, %v857
        %v859 = vmul.f32 %v854, %v858
        %vm860 = vweird.f32 %v853
        %vm861 = vweird.f32 %v854
        %vm862 = vmor %vm860, %vm861
        %v863 = vsel %vm862, %v854, %v859
        %v864 = vmul.f32 %v850, %v863
        %v865 = vld [vmem:[%s9] sm:$0x1]
        %v867 = vperm.slane %v865, 0
        %v869 = vmul.f32 %v864, %v867
        %v870 = vld [vmem:[%s10] sm:$0x1]
        %v872 = vperm.slane %v870, 0
        %v874 = vadd.f32 %v869, %v872
        %v875 = vld [vmem:[%s11] sm:$0xff]
        %v876 = vld [vmem:[%s11 + $0x8] sm:$0xff]
        %v877 = vld [vmem:[%s11 + $0x10] sm:$0xff]
        %v878 = vld [vmem:[%s11 + $0x18] sm:$0xff]
        %v879 = vld [vmem:[%s12] sm:$0x1]
        %v881 = vperm.slane %v879, 0
        %v884 = vsel %vm683, %v874, 0
        %886 = vmatpush.msra.mxu0 0.0
        %887 = vmatpush.msra.mxu0 0.0
        %888 = vmatpush.msra.mxu0 0.0
        %889 = vmatpush.msra.mxu0 0.0
        %890 = vmatpush.msra.mxu0 0.0
        %891 = vmatpush.msra.mxu0 0.0
        %892 = vmatpush.msra.mxu0 0.0
        %893 = vmatpush.msra.mxu0 0.0
        %894 = vmatpush.msra.mxu0 0.0
        %895 = vmatpush.msra.mxu0 0.0
        %896 = vmatpush.msra.mxu0 0.0
        %897 = vmatpush.msra.mxu0 0.0
        %898 = vmatpush.msra.mxu0 %v878
        %899 = vmatpush.msra.mxu0 %v877
        %900 = vmatpush.msra.mxu0 %v876
        %901 = vmatpush.msra.mxu0 %v875
        %902 = vmatmul.f32.gmra.mxu0 %v884
        %v903 = vpop.f32.mrf.mxu0
        %v904 = vadd.f32 %v881, %v903
        %905 = vdwg.mxu0
        %v906 = vmax.f32 %v904, 0.0
        %v907 = vld [vmem:[%s13] sm:$0xff]
        %v908 = vld [vmem:[%s13 + $0x8] sm:$0xff]
        %v909 = vld [vmem:[%s13 + $0x10] sm:$0xff]
        %v910 = vld [vmem:[%s13 + $0x18] sm:$0xff]
        %v911 = vld [vmem:[%s13 + $0x20] sm:$0xff]
        %v912 = vld [vmem:[%s13 + $0x28] sm:$0xff]
        %v913 = vld [vmem:[%s13 + $0x30] sm:$0xff]
        %v914 = vld [vmem:[%s13 + $0x38] sm:$0xff]
        %v915 = vld [vmem:[%s14] sm:$0x1]
        %v917 = vperm.slane %v915, 0
        %vm919 = vcmask 523264
        %v921 = vsel %vm919, %v906, 0
        %923 = vmatpush.msra.mxu0 0.0
        %924 = vmatpush.msra.mxu0 0.0
        %925 = vmatpush.msra.mxu0 0.0
        %926 = vmatpush.msra.mxu0 0.0
        %927 = vmatpush.msra.mxu0 0.0
        %928 = vmatpush.msra.mxu0 0.0
        %929 = vmatpush.msra.mxu0 0.0
        %930 = vmatpush.msra.mxu0 0.0
        %931 = vmatpush.msra.mxu0 %v914
        %932 = vmatpush.msra.mxu0 %v913
        %933 = vmatpush.msra.mxu0 %v912
        %934 = vmatpush.msra.mxu0 %v911
        %935 = vmatpush.msra.mxu0 %v910
        %936 = vmatpush.msra.mxu0 %v909
        %937 = vmatpush.msra.mxu0 %v908
        %938 = vmatpush.msra.mxu0 %v907
        %939 = vmatmul.f32.gmra.mxu0 %v921
        %v940 = vpop.f32.mrf.mxu0
        %v941 = vadd.f32 %v917, %v940
        %942 = vdwg.mxu0
        %v943 = vadd.f32 %v941, %v874
        %v944 = vsel %vm683, %v943, 0.0
        %945 = vadd.xlane.f32.xlu0 %v944
        %v946 = vpop.xlane.xlu0 %945
        %v947 = vmul.f32 %v946, 0.03125
        %v948 = vmul.f32 %v943, %v943
        %v949 = vsel %vm683, %v948, 0.0
        %950 = vadd.xlane.f32.xlu0 %v949
        %v951 = vpop.xlane.xlu0 %950
        %v952 = vmul.f32 %v951, 0.03125
        %v953 = vsub.f32 %v943, %v947
        %v954 = vmul.f32 %v947, %v947
        %v955 = vsub.f32 %v952, %v954
        %v956 = vadd.f32 %v955, 1e-06
        %v957 = vrsqrt.pop %v956
        %v958 = vmul.f32 %v957, %v956
        %v959 = vmul.f32 %v958, %v957
        %v960 = vmul.f32 0.5, %v959
        %v961 = vsub.f32 1.5, %v960
        %v962 = vmul.f32 %v957, %v961
        %vm963 = vweird.f32 %v956
        %vm964 = vweird.f32 %v957
        %vm965 = vmor %vm963, %vm964
        %v966 = vsel %vm965, %v957, %v962
        %v967 = vmul.f32 %v953, %v966
        %v968 = vld [vmem:[%s15] sm:$0x1]
        %v970 = vperm.slane %v968, 0
        %v972 = vmul.f32 %v967, %v970
        %v973 = vld [vmem:[%s16] sm:$0x1]
        %v975 = vperm.slane %v973, 0
        %v977 = vadd.f32 %v972, %v975
        %978 = vst.msk [vmem:[%s586] sm:$0xff] %vm683, %v977
        %s979 = sand.u32 %s420, 1
        %s980 = scalar_lea.sflag [#allocation6], %s979
        %s981 = sand.u32 %s420, 1
        %s982 = smul.addr %s981, 8
        %s983 = scalar_lea.vmem [#allocation5], %s982
        %s984 = sand.u32 %s448, 1
        %s985 = scalar_lea.sflag [#allocation8], %s984
        %s986 = sand.u32 %s448, 1
        %s987 = smul.addr %s986, 16
        %s988 = scalar_lea.vmem [#allocation7], %s987
        // Predicated region
        $region107: #{tpu_custom_call.1} parent=87 // pred_check
          %p989 = pneg %p430
        $region108: #{tpu_custom_call.1} parent=87 // pred_check_branch
          %991 = sbr.rel (%p989) target = $region110
        $region109: #{tpu_custom_call.1} parent=87 // pred_region
          %993 = vsyncadd %s980, 0
          %s994 = sadd.s32 %s41, %s40
          %s995 = smul.addr %s994, 8
          %s996 = scalar_lea.hbm %s17, %s995
          %s998 = sshll.u32 %s983, 4
          %s999 = int_to_ptr.vmem [resolvable:$true] %s998
          %s1000 = sshll.u32 %s996, 4
          %s1001 = int_to_ptr.hbm [resolvable:$true] %s1000
          %1003 = dma.vmem_to_hbm [thread:$0]  %s999, 128, %s1001, %s980
        $region110: #{tpu_custom_call.1} parent=87 // pred_fallthru
          _
        // Predicated region
        $region111: #{tpu_custom_call.1} parent=87 // pred_check
          %p1004 = pneg %p458
        $region112: #{tpu_custom_call.1} parent=87 // pred_check_branch
          %1006 = sbr.rel (%p1004) target = $region114
        $region113: #{tpu_custom_call.1} parent=87 // pred_region
          %1008 = vsyncadd %s985, 0
          %s1009 = smul.addr %s40, 2
          %s1010 = sadd.s32 %s41, %s1009
          %s1011 = smul.addr %s1010, 8
          %s1012 = scalar_lea.hbm %s18, %s1011
          %s1013 = sshll.u32 %s988, 4
          %s1014 = int_to_ptr.vmem [resolvable:$true] %s1013
          %s1015 = sshll.u32 %s1012, 4
          %s1016 = int_to_ptr.hbm [resolvable:$true] %s1015
          %1021 = dma.vmem_to_hbm [thread:$0]  %s1014, 256, %s1016, %s985, 128, 128, 8
        $region114: #{tpu_custom_call.1} parent=87 // pred_fallthru
          _
      $region88: #{tpu_custom_call.1} parent=5 // pred_fallthru
        _
      %p1022 = scmp.le.s32.totalorder 2, %s31
      // Predicated region
      $region115: #{tpu_custom_call.1} parent=5 // pred_check
        %p1023 = pneg %p1022
      $region116: #{tpu_custom_call.1} parent=5 // pred_check_branch
        %1025 = sbr.rel (%p1023) target = $region118
      $region117: #{tpu_custom_call.1} parent=5 // pred_region
        %s1026 = ssub.s32 %s31, 2
        // Predicated region
        $region119: #{tpu_custom_call.1} parent=117 // pred_check
          %p1027 = pneg %p436
        $region120: #{tpu_custom_call.1} parent=117 // pred_check_branch
          %1029 = sbr.rel (%p1027) target = $region122
        $region121: #{tpu_custom_call.1} parent=117 // pred_region
          %s1030 = sand.u32 %s421, 1
          %s1031 = scalar_lea.sflag [#allocation6], %s1030
          %s1032 = sand.u32 %s421, 1
          %s1033 = smul.addr %s1032, 8
          %s1034 = scalar_lea.vmem [#allocation5], %s1033
          %1036 = dma.done %s1031, 128
        $region122: #{tpu_custom_call.1} parent=117 // pred_fallthru
          _
        // Predicated region
        $region123: #{tpu_custom_call.1} parent=117 // pred_check
          %p1037 = pneg %p464
        $region124: #{tpu_custom_call.1} parent=117 // pred_check_branch
          %1039 = sbr.rel (%p1037) target = $region126
        $region125: #{tpu_custom_call.1} parent=117 // pred_region
          %s1040 = sand.u32 %s449, 1
          %s1041 = scalar_lea.sflag [#allocation8], %s1040
          %s1042 = sand.u32 %s449, 1
          %s1043 = smul.addr %s1042, 16
          %s1044 = scalar_lea.vmem [#allocation7], %s1043
          %1046 = dma.done %s1041, 256
        $region126: #{tpu_custom_call.1} parent=117 // pred_fallthru
          _
      $region118: #{tpu_custom_call.1} parent=5 // pred_fallthru
        _
    $region6: #{tpu_custom_call.1} parent=1 // loop_footer
      %s35 = sadd.s32 1, %s31
    $region7: #{tpu_custom_call.1} parent=1 // loop_footer_branch
      %30 = sbr.rel target = $region3
    $region8: #{tpu_custom_call.1} parent=1 // loop_exit
      _
    %1047 = vsyncpa [#allocation6], 1
    %s1048 = scalar_lea.sflag [#allocation6], 1
    %1049 = vsyncpa %s1048, 1
    %1050 = vsyncpa [#allocation8], 1
    %s1051 = scalar_lea.sflag [#allocation8], 1
    %1052 = vsyncpa %s1051, 1

</llo_original>
